<compile_context>
chip_gen: v6e
topology: v6e:2x2x1
jax: 0.10.0
libtpu: 0.0.40
codegen_flags: <defaults>
</compile_context>

<pallas_src>
import functools
import math

import jax
import jax.numpy as jnp
from jax.experimental import pallas as pl
from jax.experimental.pallas import tpu as pltpu

LN_EPS = 1e-5
INV_SQRT2 = 0.7071067811865476
NEG_BIG = -1e30  # finite causal-mask value (robust vs -inf)


def _layer_norm(v, g, b):
    mu = jnp.mean(v, axis=-1, keepdims=True)
    c = v - mu
    var = jnp.mean(c * c, axis=-1, keepdims=True)
    return c * jax.lax.rsqrt(var + LN_EPS) * g + b


def _block_kernel(L, E, H,
                  x_ref, g1_ref, b1_ref,
                  win_ref, bin_ref, wout_ref, bout_ref,
                  g2_ref, b2_ref, w1_ref, bm1_ref, w2_ref, bm2_ref,
                  o_ref):
    hd = E // H
    x = x_ref[0]                                     # (L, E) f32, one batch elem

    # ---- ln_1 (f32) ----
    h1 = _layer_norm(x, g1_ref[...], b1_ref[...])                      # (L, E)

    # ---- fused QKV projection: one big MXU matmul, bf16 in / f32 acc ----
    qkv = jnp.dot(h1.astype(jnp.bfloat16), win_ref[...],
                  preferred_element_type=jnp.float32) + bin_ref[...]   # (L, 3E)

    # ---- head-major split: done once per grid step (not per matmul) ----
    scale = 1.0 / math.sqrt(hd)
    q = jnp.stack([qkv[:, h * hd:(h + 1) * hd] for h in range(H)], axis=0)
    q = q * scale                                                      # (H,L,hd)
    k = jnp.stack([qkv[:, E + h * hd:E + (h + 1) * hd]
                   for h in range(H)], axis=0)                         # (H,L,hd)
    v = jnp.stack([qkv[:, 2 * E + h * hd:2 * E + (h + 1) * hd]
                   for h in range(H)], axis=0)                         # (H,L,hd)

    # ---- causal additive mask (upper triangle, diagonal excluded) ----
    row = jax.lax.broadcasted_iota(jnp.int32, (L, L), 0)
    col = jax.lax.broadcasted_iota(jnp.int32, (L, L), 1)
    mask = jnp.where(col > row, jnp.float32(NEG_BIG), jnp.float32(0.0))

    # ---- head-batched attention: two MXU matmuls total ----
    s = jnp.einsum('hqd,hkd->hqk', q.astype(jnp.bfloat16),
                   k.astype(jnp.bfloat16),
                   preferred_element_type=jnp.float32)                 # (H,L,L)
    s = s + mask[None, :, :]
    s = s - jnp.max(s, axis=-1, keepdims=True)
    p = jnp.exp(s)
    p = p * pl.reciprocal(jnp.sum(p, axis=-1, keepdims=True), approx=True)
    ctx = jnp.einsum('hqk,hkd->hqd', p.astype(jnp.bfloat16),
                     v.astype(jnp.bfloat16),
                     preferred_element_type=jnp.float32)               # (H,L,hd)

    # ---- output projection, head-major weight (H, hd, E) + sum over heads:
    #      avoids any lane-dim concat / masked sub-lane stores ----
    a = jnp.einsum('hld,hde->hle', ctx.astype(jnp.bfloat16), wout_ref[...],
                   preferred_element_type=jnp.float32)                 # (H,L,E)
    a = jnp.sum(a, axis=0) + bout_ref[...]                             # (L, E)

    # ---- residual onto ln_1(x) (matches the PyTorch module exactly) ----
    x2 = h1 + a

    # ---- ln_2 + MLP (exact erf GELU) + residual ----
    h2 = _layer_norm(x2, g2_ref[...], b2_ref[...])
    m = jnp.dot(h2.astype(jnp.bfloat16), w1_ref[...],
                preferred_element_type=jnp.float32) + bm1_ref[...]     # (L, 4E)
    m = 0.5 * m * (1.0 + jax.lax.erf(m * INV_SQRT2))
    m = jnp.dot(m.astype(jnp.bfloat16), w2_ref[...],
                preferred_element_type=jnp.float32) + bm2_ref[...]     # (L, E)

    o_ref[0] = x2 + m


def block_forward_pallas(x_lbe, params, heads):
    """x_lbe: (L, B, E) float32, PyTorch (seq, batch, embed) convention."""
    L, B, E = x_lbe.shape
    H = heads
    hd = E // H
    # (L,B,E) -> (B,L,E): kernel processes one batch element per grid step.
    x_ble = jnp.transpose(x_lbe, (1, 0, 2))

    bf16 = jnp.bfloat16
    # Pre-transpose / pre-shape / pre-cast weights in the wrapper so the
    # kernel only does lane-dense `x @ W` matmuls in bf16.
    args = (
        x_ble,
        params["g1"].reshape(1, E), params["b1"].reshape(1, E),
        params["w_in"].T.astype(bf16), params["b_in"].reshape(1, 3 * E),
        params["w_out"].T.reshape(H, hd, E).astype(bf16),
        params["b_out"].reshape(1, E),
        params["g2"].reshape(1, E), params["b2"].reshape(1, E),
        params["w_fc1"].T.astype(bf16), params["b_fc1"].reshape(1, 4 * E),
        params["w_fc2"].T.astype(bf16), params["b_fc2"].reshape(1, E),
    )

    def full(shape):
        return pl.BlockSpec(shape, lambda b: tuple(0 for _ in shape))

    in_specs = [
        pl.BlockSpec((1, L, E), lambda b: (b, 0, 0)),  # x
        full((1, E)), full((1, E)),                    # ln_1 gamma/beta
        full((E, 3 * E)), full((1, 3 * E)),            # in_proj (bf16)
        full((H, hd, E)), full((1, E)),                # out_proj (head-major)
        full((1, E)), full((1, E)),                    # ln_2 gamma/beta
        full((E, 4 * E)), full((1, 4 * E)),            # mlp fc1 (bf16)
        full((4 * E, E)), full((1, E)),                # mlp fc2 (bf16)
    ]

    # Advisory cost estimate so XLA schedules surrounding ops around the kernel.
    flops = B * (24 * L * E * E + 4 * L * L * E)
    transcendentals = B * (H * L * L + 4 * E * L + 4 * L)
    bytes_accessed = 12 * E * E * 2 + 13 * E * 4 + 2 * B * L * E * 4

    # Explicit scoped-VMEM budget: bf16 weights + activations + io blocks.
    weights_bytes = 12 * E * E * 2 + 13 * E * 4
    act_bytes = 4 * (L * 3 * E + 2 * H * L * L + L * 4 * E + 6 * L * E)
    io_bytes = 2 * 2 * L * E * 4
    vmem_limit = int(min(max(2 * (weights_bytes + act_bytes + io_bytes)
                             + (4 << 20), 32 << 20), 64 << 20))

    out_ble = pl.pallas_call(
        functools.partial(_block_kernel, L, E, H),
        out_shape=jax.ShapeDtypeStruct((B, L, E), jnp.float32),
        grid_spec=pltpu.PrefetchScalarGridSpec(
            num_scalar_prefetch=0,
            grid=(B,),
            in_specs=in_specs,
            out_specs=pl.BlockSpec((1, L, E), lambda b: (b, 0, 0)),
        ),
        compiler_params=pltpu.CompilerParams(
            dimension_semantics=("parallel",),
            vmem_limit_bytes=vmem_limit),
        cost_estimate=pl.CostEstimate(
            flops=flops, transcendentals=transcendentals,
            bytes_accessed=bytes_accessed),
    )(*args)

    return jnp.transpose(out_ble, (1, 0, 2))  # back to (L, B, E)


def block_forward_reference(x, p, heads):
    """Pure-JAX f32 mirror of the PyTorch module (x: (L, B, E))."""
    L, B, E = x.shape
    H, hd = heads, E // heads

    def ln(v, g, b):
        mu = v.mean(-1, keepdims=True)
        c = v - mu
        var = (c * c).mean(-1, keepdims=True)
        return c / jnp.sqrt(var + LN_EPS) * g + b

    h1 = ln(x, p["g1"], p["b1"])
    qkv = h1 @ p["w_in"].T + p["b_in"]
    q, k, v = jnp.split(qkv, 3, axis=-1)
    q = q.reshape(L, B, H, hd)
    k = k.reshape(L, B, H, hd)
    v = v.reshape(L, B, H, hd)
    s = jnp.einsum("lbhd,mbhd->bhlm", q, k) / math.sqrt(hd)
    mask = jnp.where(jnp.triu(jnp.ones((L, L), bool), 1), -jnp.inf, 0.0)
    s = s + mask[None, None]
    att = jax.nn.softmax(s, axis=-1)
    ctx = jnp.einsum("bhlm,mbhd->lbhd", att, v).reshape(L, B, E)
    a = ctx @ p["w_out"].T + p["b_out"]
    x2 = h1 + a
    h2 = ln(x2, p["g2"], p["b2"])
    m = h2 @ p["w_fc1"].T + p["b_fc1"]
    m = 0.5 * m * (1.0 + jax.lax.erf(m * INV_SQRT2))
    m = m @ p["w_fc2"].T + p["b_fc2"]
    return x2 + m


def init_params(key, E):
    ks = jax.random.split(key, 8)
    s = 0.02
    return {
        "g1": jnp.ones((E,), jnp.float32),
        "b1": jnp.zeros((E,), jnp.float32),
        "w_in": s * jax.random.normal(ks[0], (3 * E, E), jnp.float32),
        "b_in": s * jax.random.normal(ks[1], (3 * E,), jnp.float32),
        "w_out": s * jax.random.normal(ks[2], (E, E), jnp.float32),
        "b_out": s * jax.random.normal(ks[3], (E,), jnp.float32),
        "g2": jnp.ones((E,), jnp.float32),
        "b2": jnp.zeros((E,), jnp.float32),
        "w_fc1": s * jax.random.normal(ks[4], (4 * E, E), jnp.float32),
        "b_fc1": s * jax.random.normal(ks[5], (4 * E,), jnp.float32),
        "w_fc2": s * jax.random.normal(ks[6], (E, 4 * E), jnp.float32),
        "b_fc2": s * jax.random.normal(ks[7], (E,), jnp.float32),
    }


if __name__ == "__main__":
    # Small shapes consistent with the module: (seq, batch, embed) input.
    L, B, E, H = 8, 2, 32, 4
    key = jax.random.PRNGKey(0)
    kx, kp = jax.random.split(key)
    x = jax.random.normal(kx, (L, B, E), jnp.float32)
    params = init_params(kp, E)

    out = block_forward_pallas(x, params, H)
    out = jax.block_until_ready(out)

    ref = block_forward_reference(x, params, H)
    assert out.shape == (L, B, E)
    # bf16 matmul inputs (f32 accumulation) -> compare at bf16-appropriate tol.
    assert jnp.allclose(out, ref, atol=1e-2, rtol=1e-2), (
        float(jnp.max(jnp.abs(out - ref))))

    print("KERNEL_OK")
</pallas_src>

<mosaic_0001>
module attributes {stable_mosaic.version = 11 : i64} {
  func.func @_block_kernel(%arg0: i32, %arg1: memref<1x8x32xf32, #tpu.memory_space<vmem>>, %arg2: memref<1x32xf32, #tpu.memory_space<vmem>>, %arg3: memref<1x32xf32, #tpu.memory_space<vmem>>, %arg4: memref<32x96xbf16, #tpu.memory_space<vmem>>, %arg5: memref<1x96xf32, #tpu.memory_space<vmem>>, %arg6: memref<4x8x32xbf16, #tpu.memory_space<vmem>>, %arg7: memref<1x32xf32, #tpu.memory_space<vmem>>, %arg8: memref<1x32xf32, #tpu.memory_space<vmem>>, %arg9: memref<1x32xf32, #tpu.memory_space<vmem>>, %arg10: memref<32x128xbf16, #tpu.memory_space<vmem>>, %arg11: memref<1x128xf32, #tpu.memory_space<vmem>>, %arg12: memref<128x32xbf16, #tpu.memory_space<vmem>>, %arg13: memref<1x32xf32, #tpu.memory_space<vmem>>, %arg14: memref<1x8x32xf32, #tpu.memory_space<vmem>>) attributes {dimension_semantics = [#tpu.dimension_semantics<parallel>], iteration_bounds = array<i64: 2>, scalar_prefetch = 0 : i64, scratch_operands = 0 : i64, tpu.core_type = #tpu.core_type<tc>, window_params = [{transform_indices = @transform_0, window_bounds = array<i64: 1, 8, 32>}, {pipeline_mode = #tpu.pipeline_mode<synchronous>, transform_indices = @transform_1, window_bounds = array<i64: 1, 32>}, {pipeline_mode = #tpu.pipeline_mode<synchronous>, transform_indices = @transform_2, window_bounds = array<i64: 1, 32>}, {pipeline_mode = #tpu.pipeline_mode<synchronous>, transform_indices = @transform_3, window_bounds = array<i64: 32, 96>}, {pipeline_mode = #tpu.pipeline_mode<synchronous>, transform_indices = @transform_4, window_bounds = array<i64: 1, 96>}, {pipeline_mode = #tpu.pipeline_mode<synchronous>, transform_indices = @transform_5, window_bounds = array<i64: 4, 8, 32>}, {pipeline_mode = #tpu.pipeline_mode<synchronous>, transform_indices = @transform_6, window_bounds = array<i64: 1, 32>}, {pipeline_mode = #tpu.pipeline_mode<synchronous>, transform_indices = @transform_7, window_bounds = array<i64: 1, 32>}, {pipeline_mode = #tpu.pipeline_mode<synchronous>, transform_indices = @transform_8, window_bounds = array<i64: 1, 32>}, {pipeline_mode = #tpu.pipeline_mode<synchronous>, transform_indices = @transform_9, window_bounds = array<i64: 32, 128>}, {pipeline_mode = #tpu.pipeline_mode<synchronous>, transform_indices = @transform_10, window_bounds = array<i64: 1, 128>}, {pipeline_mode = #tpu.pipeline_mode<synchronous>, transform_indices = @transform_11, window_bounds = array<i64: 128, 32>}, {pipeline_mode = #tpu.pipeline_mode<synchronous>, transform_indices = @transform_12, window_bounds = array<i64: 1, 32>}, {transform_indices = @transform_13, window_bounds = array<i64: 1, 8, 32>}]} {
    %c0 = arith.constant 0 : index
    %c0_0 = arith.constant 0 : index
    %c0_1 = arith.constant 0 : index
    %0 = vector.load %arg1[%c0, %c0_0, %c0_1] : memref<1x8x32xf32, #tpu.memory_space<vmem>>, vector<1x8x32xf32>
    %1 = vector.shape_cast %0 : vector<1x8x32xf32> to vector<8x32xf32>
    %c0_2 = arith.constant 0 : index
    %c0_3 = arith.constant 0 : index
    %2 = vector.load %arg2[%c0_2, %c0_3] : memref<1x32xf32, #tpu.memory_space<vmem>>, vector<1x32xf32>
    %c0_4 = arith.constant 0 : index
    %c0_5 = arith.constant 0 : index
    %3 = vector.load %arg3[%c0_4, %c0_5] : memref<1x32xf32, #tpu.memory_space<vmem>>, vector<1x32xf32>
    %cst = arith.constant dense<0.000000e+00> : vector<8xf32>
    %4 = vector.multi_reduction <add>, %1, %cst [1] : vector<8x32xf32> to vector<8xf32>
    %5 = vector.shape_cast %4 : vector<8xf32> to vector<8x1xf32>
    %cst_6 = arith.constant 3.200000e+01 : f32
    %6 = vector.broadcast %cst_6 : f32 to vector<8x1xf32>
    %7 = arith.divf %5, %6 : vector<8x1xf32>
    %8 = vector.broadcast %7 : vector<8x1xf32> to vector<8x32xf32>
    %9 = arith.subf %1, %8 : vector<8x32xf32>
    %10 = arith.mulf %9, %9 : vector<8x32xf32>
    %cst_7 = arith.constant dense<0.000000e+00> : vector<8xf32>
    %11 = vector.multi_reduction <add>, %10, %cst_7 [1] : vector<8x32xf32> to vector<8xf32>
    %12 = vector.shape_cast %11 : vector<8xf32> to vector<8x1xf32>
    %cst_8 = arith.constant 3.200000e+01 : f32
    %13 = vector.broadcast %cst_8 : f32 to vector<8x1xf32>
    %14 = arith.divf %12, %13 : vector<8x1xf32>
    %cst_9 = arith.constant 9.99999974E-6 : f32
    %15 = vector.broadcast %cst_9 : f32 to vector<8x1xf32>
    %16 = arith.addf %14, %15 : vector<8x1xf32>
    %17 = math.rsqrt %16 : vector<8x1xf32>
    %18 = vector.broadcast %17 : vector<8x1xf32> to vector<8x32xf32>
    %19 = arith.mulf %9, %18 : vector<8x32xf32>
    %20 = vector.broadcast %2 : vector<1x32xf32> to vector<8x32xf32>
    %21 = arith.mulf %19, %20 : vector<8x32xf32>
    %22 = vector.broadcast %3 : vector<1x32xf32> to vector<8x32xf32>
    %23 = arith.addf %21, %22 : vector<8x32xf32>
    %24 = arith.truncf %23 : vector<8x32xf32> to vector<8x32xbf16>
    %c0_10 = arith.constant 0 : index
    %c0_11 = arith.constant 0 : index
    %25 = vector.load %arg4[%c0_10, %c0_11] : memref<32x96xbf16, #tpu.memory_space<vmem>>, vector<32x96xbf16>
    %cst_12 = arith.constant dense<0.000000e+00> : vector<8x96xf32>
    %26 = tpu.matmul %24, %25, %cst_12 {dimension_numbers = #tpu.dot_dimension_numbers<[1], [0], [0], [1], [0, 0, 1, 1], [], []>} : vector<8x32xbf16>, vector<32x96xbf16>, vector<8x96xf32> -> vector<8x96xf32>
    %c0_13 = arith.constant 0 : index
    %c0_14 = arith.constant 0 : index
    %27 = vector.load %arg5[%c0_13, %c0_14] : memref<1x96xf32, #tpu.memory_space<vmem>>, vector<1x96xf32>
    %28 = vector.broadcast %27 : vector<1x96xf32> to vector<8x96xf32>
    %29 = arith.addf %26, %28 : vector<8x96xf32>
    %30 = vector.extract_strided_slice %29 {offsets = [0, 0], sizes = [8, 8], strides = [1, 1]} : vector<8x96xf32> to vector<8x8xf32>
    %31 = vector.extract_strided_slice %29 {offsets = [0, 8], sizes = [8, 8], strides = [1, 1]} : vector<8x96xf32> to vector<8x8xf32>
    %32 = vector.extract_strided_slice %29 {offsets = [0, 16], sizes = [8, 8], strides = [1, 1]} : vector<8x96xf32> to vector<8x8xf32>
    %33 = vector.extract_strided_slice %29 {offsets = [0, 24], sizes = [8, 8], strides = [1, 1]} : vector<8x96xf32> to vector<8x8xf32>
    %34 = vector.shape_cast %30 : vector<8x8xf32> to vector<1x8x8xf32>
    %35 = vector.shape_cast %31 : vector<8x8xf32> to vector<1x8x8xf32>
    %36 = vector.shape_cast %32 : vector<8x8xf32> to vector<1x8x8xf32>
    %37 = vector.shape_cast %33 : vector<8x8xf32> to vector<1x8x8xf32>
    %38 = tpu.concatenate %34, %35, %36, %37 in 0 : vector<1x8x8xf32>, vector<1x8x8xf32>, vector<1x8x8xf32>, vector<1x8x8xf32> -> vector<4x8x8xf32>
    %cst_15 = arith.constant 0.353553385 : f32
    %39 = vector.broadcast %cst_15 : f32 to vector<4x8x8xf32>
    %40 = arith.mulf %38, %39 : vector<4x8x8xf32>
    %41 = vector.extract_strided_slice %29 {offsets = [0, 32], sizes = [8, 8], strides = [1, 1]} : vector<8x96xf32> to vector<8x8xf32>
    %42 = vector.extract_strided_slice %29 {offsets = [0, 40], sizes = [8, 8], strides = [1, 1]} : vector<8x96xf32> to vector<8x8xf32>
    %43 = vector.extract_strided_slice %29 {offsets = [0, 48], sizes = [8, 8], strides = [1, 1]} : vector<8x96xf32> to vector<8x8xf32>
    %44 = vector.extract_strided_slice %29 {offsets = [0, 56], sizes = [8, 8], strides = [1, 1]} : vector<8x96xf32> to vector<8x8xf32>
    %45 = vector.shape_cast %41 : vector<8x8xf32> to vector<1x8x8xf32>
    %46 = vector.shape_cast %42 : vector<8x8xf32> to vector<1x8x8xf32>
    %47 = vector.shape_cast %43 : vector<8x8xf32> to vector<1x8x8xf32>
    %48 = vector.shape_cast %44 : vector<8x8xf32> to vector<1x8x8xf32>
    %49 = tpu.concatenate %45, %46, %47, %48 in 0 : vector<1x8x8xf32>, vector<1x8x8xf32>, vector<1x8x8xf32>, vector<1x8x8xf32> -> vector<4x8x8xf32>
    %50 = vector.extract_strided_slice %29 {offsets = [0, 64], sizes = [8, 8], strides = [1, 1]} : vector<8x96xf32> to vector<8x8xf32>
    %51 = vector.extract_strided_slice %29 {offsets = [0, 72], sizes = [8, 8], strides = [1, 1]} : vector<8x96xf32> to vector<8x8xf32>
    %52 = vector.extract_strided_slice %29 {offsets = [0, 80], sizes = [8, 8], strides = [1, 1]} : vector<8x96xf32> to vector<8x8xf32>
    %53 = vector.extract_strided_slice %29 {offsets = [0, 88], sizes = [8, 8], strides = [1, 1]} : vector<8x96xf32> to vector<8x8xf32>
    %54 = vector.shape_cast %50 : vector<8x8xf32> to vector<1x8x8xf32>
    %55 = vector.shape_cast %51 : vector<8x8xf32> to vector<1x8x8xf32>
    %56 = vector.shape_cast %52 : vector<8x8xf32> to vector<1x8x8xf32>
    %57 = vector.shape_cast %53 : vector<8x8xf32> to vector<1x8x8xf32>
    %58 = tpu.concatenate %54, %55, %56, %57 in 0 : vector<1x8x8xf32>, vector<1x8x8xf32>, vector<1x8x8xf32>, vector<1x8x8xf32> -> vector<4x8x8xf32>
    %59 = tpu.iota {dimensions = array<i32: 0>} : vector<8x8xi32>
    %60 = tpu.iota {dimensions = array<i32: 1>} : vector<8x8xi32>
    %61 = arith.cmpi sgt, %60, %59 : vector<8x8xi32>
    %cst_16 = arith.constant -1.000000e+30 : f32
    %cst_17 = arith.constant 0.000000e+00 : f32
    %62 = vector.broadcast %cst_16 : f32 to vector<8x8xf32>
    %63 = vector.broadcast %cst_17 : f32 to vector<8x8xf32>
    %64 = arith.select %61, %62, %63 : vector<8x8xi1>, vector<8x8xf32>
    %65 = arith.truncf %40 : vector<4x8x8xf32> to vector<4x8x8xbf16>
    %66 = arith.truncf %49 : vector<4x8x8xf32> to vector<4x8x8xbf16>
    "tpu.trace_start"() <{level = 10 : i32, message = "hqd,hkd->hqk"}> : () -> ()
    %cst_18 = arith.constant dense<0.000000e+00> : vector<4x8x8xf32>
    %67 = tpu.matmul %65, %66, %cst_18 {dimension_numbers = #tpu.dot_dimension_numbers<[2], [2], [1], [1], [0, 0, 0, 1, 1, 1], [0], [0]>} : vector<4x8x8xbf16>, vector<4x8x8xbf16>, vector<4x8x8xf32> -> vector<4x8x8xf32>
    "tpu.trace_stop"() : () -> ()
    %68 = vector.shape_cast %64 : vector<8x8xf32> to vector<1x8x8xf32>
    %69 = vector.broadcast %68 : vector<1x8x8xf32> to vector<4x8x8xf32>
    %70 = arith.addf %67, %69 : vector<4x8x8xf32>
    %cst_19 = arith.constant dense<0xFF800000> : vector<4x8xf32>
    %71 = vector.multi_reduction <maximumf>, %70, %cst_19 [2] : vector<4x8x8xf32> to vector<4x8xf32>
    %72 = vector.shape_cast %71 : vector<4x8xf32> to vector<4x8x1xf32>
    %73 = vector.broadcast %72 : vector<4x8x1xf32> to vector<4x8x8xf32>
    %74 = arith.subf %70, %73 : vector<4x8x8xf32>
    %75 = math.exp %74 : vector<4x8x8xf32>
    %cst_20 = arith.constant dense<0.000000e+00> : vector<4x8xf32>
    %76 = vector.multi_reduction <add>, %75, %cst_20 [2] : vector<4x8x8xf32> to vector<4x8xf32>
    %77 = vector.shape_cast %76 : vector<4x8xf32> to vector<4x8x1xf32>
    %78 = tpu.reciprocal %77 {approx = true} : vector<4x8x1xf32> -> vector<4x8x1xf32>
    %79 = vector.broadcast %78 : vector<4x8x1xf32> to vector<4x8x8xf32>
    %80 = arith.mulf %75, %79 : vector<4x8x8xf32>
    %81 = arith.truncf %80 : vector<4x8x8xf32> to vector<4x8x8xbf16>
    %82 = arith.truncf %58 : vector<4x8x8xf32> to vector<4x8x8xbf16>
    "tpu.trace_start"() <{level = 10 : i32, message = "hqk,hkd->hqd"}> : () -> ()
    %cst_21 = arith.constant dense<0.000000e+00> : vector<4x8x8xf32>
    %83 = tpu.matmul %81, %82, %cst_21 {dimension_numbers = #tpu.dot_dimension_numbers<[2], [1], [1], [2], [0, 0, 0, 1, 1, 2], [0], [0]>} : vector<4x8x8xbf16>, vector<4x8x8xbf16>, vector<4x8x8xf32> -> vector<4x8x8xf32>
    "tpu.trace_stop"() : () -> ()
    %84 = arith.truncf %83 : vector<4x8x8xf32> to vector<4x8x8xbf16>
    %c0_22 = arith.constant 0 : index
    %c0_23 = arith.constant 0 : index
    %c0_24 = arith.constant 0 : index
    %85 = vector.load %arg6[%c0_22, %c0_23, %c0_24] : memref<4x8x32xbf16, #tpu.memory_space<vmem>>, vector<4x8x32xbf16>
    "tpu.trace_start"() <{level = 10 : i32, message = "hld,hde->hle"}> : () -> ()
    %cst_25 = arith.constant dense<0.000000e+00> : vector<4x8x32xf32>
    %86 = tpu.matmul %84, %85, %cst_25 {dimension_numbers = #tpu.dot_dimension_numbers<[2], [1], [1], [2], [0, 0, 0, 1, 1, 2], [0], [0]>} : vector<4x8x8xbf16>, vector<4x8x32xbf16>, vector<4x8x32xf32> -> vector<4x8x32xf32>
    "tpu.trace_stop"() : () -> ()
    %cst_26 = arith.constant dense<0.000000e+00> : vector<8x32xf32>
    %87 = vector.multi_reduction <add>, %86, %cst_26 [0] : vector<4x8x32xf32> to vector<8x32xf32>
    %c0_27 = arith.constant 0 : index
    %c0_28 = arith.constant 0 : index
    %88 = vector.load %arg7[%c0_27, %c0_28] : memref<1x32xf32, #tpu.memory_space<vmem>>, vector<1x32xf32>
    %89 = vector.broadcast %88 : vector<1x32xf32> to vector<8x32xf32>
    %90 = arith.addf %87, %89 : vector<8x32xf32>
    %91 = arith.addf %23, %90 : vector<8x32xf32>
    %c0_29 = arith.constant 0 : index
    %c0_30 = arith.constant 0 : index
    %92 = vector.load %arg8[%c0_29, %c0_30] : memref<1x32xf32, #tpu.memory_space<vmem>>, vector<1x32xf32>
    %c0_31 = arith.constant 0 : index
    %c0_32 = arith.constant 0 : index
    %93 = vector.load %arg9[%c0_31, %c0_32] : memref<1x32xf32, #tpu.memory_space<vmem>>, vector<1x32xf32>
    %cst_33 = arith.constant dense<0.000000e+00> : vector<8xf32>
    %94 = vector.multi_reduction <add>, %91, %cst_33 [1] : vector<8x32xf32> to vector<8xf32>
    %95 = vector.shape_cast %94 : vector<8xf32> to vector<8x1xf32>
    %cst_34 = arith.constant 3.200000e+01 : f32
    %96 = vector.broadcast %cst_34 : f32 to vector<8x1xf32>
    %97 = arith.divf %95, %96 : vector<8x1xf32>
    %98 = vector.broadcast %97 : vector<8x1xf32> to vector<8x32xf32>
    %99 = arith.subf %91, %98 : vector<8x32xf32>
    %100 = arith.mulf %99, %99 : vector<8x32xf32>
    %cst_35 = arith.constant dense<0.000000e+00> : vector<8xf32>
    %101 = vector.multi_reduction <add>, %100, %cst_35 [1] : vector<8x32xf32> to vector<8xf32>
    %102 = vector.shape_cast %101 : vector<8xf32> to vector<8x1xf32>
    %cst_36 = arith.constant 3.200000e+01 : f32
    %103 = vector.broadcast %cst_36 : f32 to vector<8x1xf32>
    %104 = arith.divf %102, %103 : vector<8x1xf32>
    %cst_37 = arith.constant 9.99999974E-6 : f32
    %105 = vector.broadcast %cst_37 : f32 to vector<8x1xf32>
    %106 = arith.addf %104, %105 : vector<8x1xf32>
    %107 = math.rsqrt %106 : vector<8x1xf32>
    %108 = vector.broadcast %107 : vector<8x1xf32> to vector<8x32xf32>
    %109 = arith.mulf %99, %108 : vector<8x32xf32>
    %110 = vector.broadcast %92 : vector<1x32xf32> to vector<8x32xf32>
    %111 = arith.mulf %109, %110 : vector<8x32xf32>
    %112 = vector.broadcast %93 : vector<1x32xf32> to vector<8x32xf32>
    %113 = arith.addf %111, %112 : vector<8x32xf32>
    %114 = arith.truncf %113 : vector<8x32xf32> to vector<8x32xbf16>
    %c0_38 = arith.constant 0 : index
    %c0_39 = arith.constant 0 : index
    %115 = vector.load %arg10[%c0_38, %c0_39] : memref<32x128xbf16, #tpu.memory_space<vmem>>, vector<32x128xbf16>
    %cst_40 = arith.constant dense<0.000000e+00> : vector<8x128xf32>
    %116 = tpu.matmul %114, %115, %cst_40 {dimension_numbers = #tpu.dot_dimension_numbers<[1], [0], [0], [1], [0, 0, 1, 1], [], []>} : vector<8x32xbf16>, vector<32x128xbf16>, vector<8x128xf32> -> vector<8x128xf32>
    %c0_41 = arith.constant 0 : index
    %c0_42 = arith.constant 0 : index
    %117 = vector.load %arg11[%c0_41, %c0_42] : memref<1x128xf32, #tpu.memory_space<vmem>>, vector<1x128xf32>
    %118 = vector.broadcast %117 : vector<1x128xf32> to vector<8x128xf32>
    %119 = arith.addf %116, %118 : vector<8x128xf32>
    %cst_43 = arith.constant 5.000000e-01 : f32
    %120 = vector.broadcast %cst_43 : f32 to vector<8x128xf32>
    %121 = arith.mulf %120, %119 : vector<8x128xf32>
    %cst_44 = arith.constant 0.707106769 : f32
    %122 = vector.broadcast %cst_44 : f32 to vector<8x128xf32>
    %123 = arith.mulf %119, %122 : vector<8x128xf32>
    %124 = math.erf %123 : vector<8x128xf32>
    %cst_45 = arith.constant 1.000000e+00 : f32
    %125 = vector.broadcast %cst_45 : f32 to vector<8x128xf32>
    %126 = arith.addf %125, %124 : vector<8x128xf32>
    %127 = arith.mulf %121, %126 : vector<8x128xf32>
    %128 = arith.truncf %127 : vector<8x128xf32> to vector<8x128xbf16>
    %c0_46 = arith.constant 0 : index
    %c0_47 = arith.constant 0 : index
    %129 = vector.load %arg12[%c0_46, %c0_47] : memref<128x32xbf16, #tpu.memory_space<vmem>>, vector<128x32xbf16>
    %cst_48 = arith.constant dense<0.000000e+00> : vector<8x32xf32>
    %130 = tpu.matmul %128, %129, %cst_48 {dimension_numbers = #tpu.dot_dimension_numbers<[1], [0], [0], [1], [0, 0, 1, 1], [], []>} : vector<8x128xbf16>, vector<128x32xbf16>, vector<8x32xf32> -> vector<8x32xf32>
    %c0_49 = arith.constant 0 : index
    %c0_50 = arith.constant 0 : index
    %131 = vector.load %arg13[%c0_49, %c0_50] : memref<1x32xf32, #tpu.memory_space<vmem>>, vector<1x32xf32>
    %132 = vector.broadcast %131 : vector<1x32xf32> to vector<8x32xf32>
    %133 = arith.addf %130, %132 : vector<8x32xf32>
    %134 = arith.addf %91, %133 : vector<8x32xf32>
    %c0_51 = arith.constant 0 : index
    %c0_52 = arith.constant 0 : index
    %c0_53 = arith.constant 0 : index
    %135 = vector.load %arg14[%c0_51, %c0_52, %c0_53] : memref<1x8x32xf32, #tpu.memory_space<vmem>>, vector<1x8x32xf32>
    %136 = vector.shape_cast %135 : vector<1x8x32xf32> to vector<8x32xf32>
    %137 = vector.shape_cast %134 : vector<8x32xf32> to vector<1x8x32xf32>
    tpu.vector_store %arg14[%c0_51, %c0_52, %c0_53], %137 {strides = array<i32>} : memref<1x8x32xf32, #tpu.memory_space<vmem>>, vector<1x8x32xf32>,
    return
  }
  func.func @transform_0(%arg0: i32) -> (i32, i32, i32) {
    %c0_i32 = arith.constant 0 : i32
    %c0_i32_0 = arith.constant 0 : i32
    %c0_i32_1 = arith.constant 0 : i32
    return %arg0, %c0_i32, %c0_i32_0 : i32, i32, i32
  }
  func.func @transform_1(%arg0: i32) -> (i32, i32) {
    %c0_i32 = arith.constant 0 : i32
    %c0_i32_0 = arith.constant 0 : i32
    %c0_i32_1 = arith.constant 0 : i32
    return %c0_i32, %c0_i32_0 : i32, i32
  }
  func.func @transform_2(%arg0: i32) -> (i32, i32) {
    %c0_i32 = arith.constant 0 : i32
    %c0_i32_0 = arith.constant 0 : i32
    %c0_i32_1 = arith.constant 0 : i32
    return %c0_i32, %c0_i32_0 : i32, i32
  }
  func.func @transform_3(%arg0: i32) -> (i32, i32) {
    %c0_i32 = arith.constant 0 : i32
    %c0_i32_0 = arith.constant 0 : i32
    %c0_i32_1 = arith.constant 0 : i32
    return %c0_i32, %c0_i32_0 : i32, i32
  }
  func.func @transform_4(%arg0: i32) -> (i32, i32) {
    %c0_i32 = arith.constant 0 : i32
    %c0_i32_0 = arith.constant 0 : i32
    %c0_i32_1 = arith.constant 0 : i32
    return %c0_i32, %c0_i32_0 : i32, i32
  }
  func.func @transform_5(%arg0: i32) -> (i32, i32, i32) {
    %c0_i32 = arith.constant 0 : i32
    %c0_i32_0 = arith.constant 0 : i32
    %c0_i32_1 = arith.constant 0 : i32
    %c0_i32_2 = arith.constant 0 : i32
    return %c0_i32, %c0_i32_0, %c0_i32_1 : i32, i32, i32
  }
  func.func @transform_6(%arg0: i32) -> (i32, i32) {
    %c0_i32 = arith.constant 0 : i32
    %c0_i32_0 = arith.constant 0 : i32
    %c0_i32_1 = arith.constant 0 : i32
    return %c0_i32, %c0_i32_0 : i32, i32
  }
  func.func @transform_7(%arg0: i32) -> (i32, i32) {
    %c0_i32 = arith.constant 0 : i32
    %c0_i32_0 = arith.constant 0 : i32
    %c0_i32_1 = arith.constant 0 : i32
    return %c0_i32, %c0_i32_0 : i32, i32
  }
  func.func @transform_8(%arg0: i32) -> (i32, i32) {
    %c0_i32 = arith.constant 0 : i32
    %c0_i32_0 = arith.constant 0 : i32
    %c0_i32_1 = arith.constant 0 : i32
    return %c0_i32, %c0_i32_0 : i32, i32
  }
  func.func @transform_9(%arg0: i32) -> (i32, i32) {
    %c0_i32 = arith.constant 0 : i32
    %c0_i32_0 = arith.constant 0 : i32
    %c0_i32_1 = arith.constant 0 : i32
    return %c0_i32, %c0_i32_0 : i32, i32
  }
  func.func @transform_10(%arg0: i32) -> (i32, i32) {
    %c0_i32 = arith.constant 0 : i32
    %c0_i32_0 = arith.constant 0 : i32
    %c0_i32_1 = arith.constant 0 : i32
    return %c0_i32, %c0_i32_0 : i32, i32
  }
  func.func @transform_11(%arg0: i32) -> (i32, i32) {
    %c0_i32 = arith.constant 0 : i32
    %c0_i32_0 = arith.constant 0 : i32
    %c0_i32_1 = arith.constant 0 : i32
    return %c0_i32, %c0_i32_0 : i32, i32
  }
  func.func @transform_12(%arg0: i32) -> (i32, i32) {
    %c0_i32 = arith.constant 0 : i32
    %c0_i32_0 = arith.constant 0 : i32
    %c0_i32_1 = arith.constant 0 : i32
    return %c0_i32, %c0_i32_0 : i32, i32
  }
  func.func @transform_13(%arg0: i32) -> (i32, i32, i32) {
    %c0_i32 = arith.constant 0 : i32
    %c0_i32_0 = arith.constant 0 : i32
    %c0_i32_1 = arith.constant 0 : i32
    return %arg0, %c0_i32, %c0_i32_0 : i32, i32, i32
  }
}

</mosaic_0001>

<llo_original>
// kernel: tpu_custom_call.1
$region0: #{tpu_custom_call.1}
  #allocation0 [shape = 'u32[]', space=smem, size = 0x4, offset = 0x4, fixed_abs, tag = 'smem constant byte address 0x4 - core index']
  #allocation1 [shape = 'u32[144,128]{1,0:T(1,128)}', space=vmem, size = 0x12000, scoped, tag = 'internal scratch']
  %s0 = inlined_call_operand.vmem [shape: f32[2,8,32], index: 0, kind: input, shape index: {}]
  %s1 = inlined_call_operand.vmem [shape: f32[1,32], index: 1, kind: input, shape index: {}]
  %s2 = inlined_call_operand.vmem [shape: f32[1,32], index: 2, kind: input, shape index: {}]
  %s3 = inlined_call_operand.vmem [shape: bf16[32,96], index: 3, kind: input, shape index: {}]
  %s4 = inlined_call_operand.vmem [shape: f32[1,96], index: 4, kind: input, shape index: {}]
  %s5 = inlined_call_operand.vmem [shape: bf16[4,8,32], index: 5, kind: input, shape index: {}]
  %s6 = inlined_call_operand.vmem [shape: f32[1,32], index: 6, kind: input, shape index: {}]
  %s7 = inlined_call_operand.vmem [shape: f32[1,32], index: 7, kind: input, shape index: {}]
  %s8 = inlined_call_operand.vmem [shape: f32[1,32], index: 8, kind: input, shape index: {}]
  %s9 = inlined_call_operand.vmem [shape: bf16[32,128], index: 9, kind: input, shape index: {}]
  %s10 = inlined_call_operand.vmem [shape: f32[1,128], index: 10, kind: input, shape index: {}]
  %s11 = inlined_call_operand.vmem [shape: bf16[128,32], index: 11, kind: input, shape index: {}]
  %s12 = inlined_call_operand.vmem [shape: f32[1,32], index: 12, kind: input, shape index: {}]
  %s13 = inlined_call_operand.hbm [shape: f32[2,8,32], index: 13, kind: output, shape index: {}]
  %s14 = sld [smem:[#allocation0]]
  $region85: #{tpu_custom_call.1} parent=0
    _
  %s16 = ssub.s32 1, %s14
  %s17 = scalar_select 0, %s16, %s14
  $region1: #{tpu_custom_call.1} parent=0
    #allocation2 [shape = 'u8[8192]{0}', space=vmem, size = 0x2000, scoped, tag = 'output window, operand 0']
    #allocation3 [shape = 's32[2]{0}', space=sflag, size = 0x8, scoped, tag = 'scoped memory for tpu_custom_call.1']
    %18 = vsyncpa [#allocation3], 0
    %s19 = scalar_lea.sflag [#allocation3], 1
    %20 = vsyncpa %s19, 0
    loop: start=0, step=1, limit=4
    $region2: #{tpu_custom_call.1} parent=1 // loop_pre_header
      _
    $region3: #{tpu_custom_call.1} parent=1 // loop_header
      %s22 = sphi 0, %s26
      %p23 = scmp.ge.s32.totalorder %s22, 4
      %s32 = sphi 0, %s34
      %s35 = sphi 0, %s32
      %s36 = sphi 0, %s35
      %s52 = sphi 0, %s36
      %s56 = sphi 0, %s56
      %s58 = sphi 0, %s56
      %s59 = sphi 0, %s58
      %s73 = sphi 0, %s59
      %s77 = sphi 0, %s77
      %s79 = sphi 0, %s77
      %s80 = sphi 0, %s79
      %s94 = sphi 0, %s80
      %s98 = sphi 0, %s98
      %s100 = sphi 0, %s98
      %s101 = sphi 0, %s100
      %s115 = sphi 0, %s101
      %s119 = sphi 0, %s119
      %s121 = sphi 0, %s119
      %s122 = sphi 0, %s121
      %s136 = sphi 0, %s122
      %s140 = sphi 0, %s140
      %s142 = sphi 0, %s140
      %s143 = sphi 0, %s142
      %s157 = sphi 0, %s143
      %s161 = sphi 0, %s161
      %s163 = sphi 0, %s161
      %s164 = sphi 0, %s163
      %s178 = sphi 0, %s164
      %s182 = sphi 0, %s182
      %s184 = sphi 0, %s182
      %s185 = sphi 0, %s184
      %s199 = sphi 0, %s185
      %s203 = sphi 0, %s203
      %s205 = sphi 0, %s203
      %s206 = sphi 0, %s205
      %s220 = sphi 0, %s206
      %s224 = sphi 0, %s224
      %s226 = sphi 0, %s224
      %s227 = sphi 0, %s226
      %s241 = sphi 0, %s227
      %s245 = sphi 0, %s245
      %s247 = sphi 0, %s245
      %s248 = sphi 0, %s247
      %s262 = sphi 0, %s248
      %s266 = sphi 0, %s266
      %s268 = sphi 0, %s266
      %s269 = sphi 0, %s268
      %s283 = sphi 0, %s269
      %s287 = sphi 0, %s287
      %s289 = sphi 0, %s287
      %s290 = sphi 0, %s289
      %s304 = sphi 0, %s290
      %s310 = sphi 0, %s312
      %s313 = sphi 0, %s310
      %s314 = sphi 0, %s313
      %s330 = sphi 0, %s314
    $region4: #{tpu_custom_call.1} parent=1 // loop_header_branch
      %25 = sbr.rel (%p23) target = $region8
    $region5: #{tpu_custom_call.1} parent=1 // loop_body
      %s27 = ssub.s32 %s22, 1
      %s28 = ssub.s32 %s22, 2
      %s29 = sadd.s32 %s22, 1
      %s30 = ssub.s32 %s22, %s29
      %p31 = scmp.eq.s32.totalorder %s30, 0
      %s33 = sadd.s32 %s32, 1
      %s34 = scalar_select %p31, %s32, %s33
      %p37 = pneg %p31
      %p38 = scmp.eq.s32.totalorder %s22, 1
      %p39 = por %p37, %p38
      %p40 = scmp.ne.s32.totalorder %s32, %s35
      %p41 = scmp.eq.s32.totalorder %s22, 0
      %p42 = por %p40, %p41
      %p43 = scmp.ne.s32.totalorder %s32, %s35
      %p44 = scmp.eq.s32.totalorder %s27, 1
      %p45 = por %p43, %p44
      %p46 = scmp.ne.s32.totalorder %s35, %s36
      %p47 = scmp.eq.s32.totalorder %s27, 0
      %p48 = por %p46, %p47
      %p49 = scmp.ne.s32.totalorder %s35, %s36
      %p50 = scmp.eq.s32.totalorder %s28, 1
      %p51 = por %p49, %p50
      %p53 = scmp.ne.s32.totalorder %s36, %s52
      %p54 = scmp.eq.s32.totalorder %s28, 0
      %p55 = por %p53, %p54
      %s57 = sadd.s32 %s56, 1
      %p60 = scmp.eq.s32.totalorder %s22, 1
      %p61 = scmp.ne.s32.totalorder %s56, %s58
      %p62 = scmp.eq.s32.totalorder %s22, 0
      %p63 = por %p61, %p62
      %p64 = scmp.ne.s32.totalorder %s56, %s58
      %p65 = scmp.eq.s32.totalorder %s27, 1
      %p66 = por %p64, %p65
      %p67 = scmp.ne.s32.totalorder %s58, %s59
      %p68 = scmp.eq.s32.totalorder %s27, 0
      %p69 = por %p67, %p68
      %p70 = scmp.ne.s32.totalorder %s58, %s59
      %p71 = scmp.eq.s32.totalorder %s28, 1
      %p72 = por %p70, %p71
      %p74 = scmp.ne.s32.totalorder %s59, %s73
      %p75 = scmp.eq.s32.totalorder %s28, 0
      %p76 = por %p74, %p75
      %s78 = sadd.s32 %s77, 1
      %p81 = scmp.eq.s32.totalorder %s22, 1
      %p82 = scmp.ne.s32.totalorder %s77, %s79
      %p83 = scmp.eq.s32.totalorder %s22, 0
      %p84 = por %p82, %p83
      %p85 = scmp.ne.s32.totalorder %s77, %s79
      %p86 = scmp.eq.s32.totalorder %s27, 1
      %p87 = por %p85, %p86
      %p88 = scmp.ne.s32.totalorder %s79, %s80
      %p89 = scmp.eq.s32.totalorder %s27, 0
      %p90 = por %p88, %p89
      %p91 = scmp.ne.s32.totalorder %s79, %s80
      %p92 = scmp.eq.s32.totalorder %s28, 1
      %p93 = por %p91, %p92
      %p95 = scmp.ne.s32.totalorder %s80, %s94
      %p96 = scmp.eq.s32.totalorder %s28, 0
      %p97 = por %p95, %p96
      %s99 = sadd.s32 %s98, 1
      %p102 = scmp.eq.s32.totalorder %s22, 1
      %p103 = scmp.ne.s32.totalorder %s98, %s100
      %p104 = scmp.eq.s32.totalorder %s22, 0
      %p105 = por %p103, %p104
      %p106 = scmp.ne.s32.totalorder %s98, %s100
      %p107 = scmp.eq.s32.totalorder %s27, 1
      %p108 = por %p106, %p107
      %p109 = scmp.ne.s32.totalorder %s100, %s101
      %p110 = scmp.eq.s32.totalorder %s27, 0
      %p111 = por %p109, %p110
      %p112 = scmp.ne.s32.totalorder %s100, %s101
      %p113 = scmp.eq.s32.totalorder %s28, 1
      %p114 = por %p112, %p113
      %p116 = scmp.ne.s32.totalorder %s101, %s115
      %p117 = scmp.eq.s32.totalorder %s28, 0
      %p118 = por %p116, %p117
      %s120 = sadd.s32 %s119, 1
      %p123 = scmp.eq.s32.totalorder %s22, 1
      %p124 = scmp.ne.s32.totalorder %s119, %s121
      %p125 = scmp.eq.s32.totalorder %s22, 0
      %p126 = por %p124, %p125
      %p127 = scmp.ne.s32.totalorder %s119, %s121
      %p128 = scmp.eq.s32.totalorder %s27, 1
      %p129 = por %p127, %p128
      %p130 = scmp.ne.s32.totalorder %s121, %s122
      %p131 = scmp.eq.s32.totalorder %s27, 0
      %p132 = por %p130, %p131
      %p133 = scmp.ne.s32.totalorder %s121, %s122
      %p134 = scmp.eq.s32.totalorder %s28, 1
      %p135 = por %p133, %p134
      %p137 = scmp.ne.s32.totalorder %s122, %s136
      %p138 = scmp.eq.s32.totalorder %s28, 0
      %p139 = por %p137, %p138
      %s141 = sadd.s32 %s140, 1
      %p144 = scmp.eq.s32.totalorder %s22, 1
      %p145 = scmp.ne.s32.totalorder %s140, %s142
      %p146 = scmp.eq.s32.totalorder %s22, 0
      %p147 = por %p145, %p146
      %p148 = scmp.ne.s32.totalorder %s140, %s142
      %p149 = scmp.eq.s32.totalorder %s27, 1
      %p150 = por %p148, %p149
      %p151 = scmp.ne.s32.totalorder %s142, %s143
      %p152 = scmp.eq.s32.totalorder %s27, 0
      %p153 = por %p151, %p152
      %p154 = scmp.ne.s32.totalorder %s142, %s143
      %p155 = scmp.eq.s32.totalorder %s28, 1
      %p156 = por %p154, %p155
      %p158 = scmp.ne.s32.totalorder %s143, %s157
      %p159 = scmp.eq.s32.totalorder %s28, 0
      %p160 = por %p158, %p159
      %s162 = sadd.s32 %s161, 1
      %p165 = scmp.eq.s32.totalorder %s22, 1
      %p166 = scmp.ne.s32.totalorder %s161, %s163
      %p167 = scmp.eq.s32.totalorder %s22, 0
      %p168 = por %p166, %p167
      %p169 = scmp.ne.s32.totalorder %s161, %s163
      %p170 = scmp.eq.s32.totalorder %s27, 1
      %p171 = por %p169, %p170
      %p172 = scmp.ne.s32.totalorder %s163, %s164
      %p173 = scmp.eq.s32.totalorder %s27, 0
      %p174 = por %p172, %p173
      %p175 = scmp.ne.s32.totalorder %s163, %s164
      %p176 = scmp.eq.s32.totalorder %s28, 1
      %p177 = por %p175, %p176
      %p179 = scmp.ne.s32.totalorder %s164, %s178
      %p180 = scmp.eq.s32.totalorder %s28, 0
      %p181 = por %p179, %p180
      %s183 = sadd.s32 %s182, 1
      %p186 = scmp.eq.s32.totalorder %s22, 1
      %p187 = scmp.ne.s32.totalorder %s182, %s184
      %p188 = scmp.eq.s32.totalorder %s22, 0
      %p189 = por %p187, %p188
      %p190 = scmp.ne.s32.totalorder %s182, %s184
      %p191 = scmp.eq.s32.totalorder %s27, 1
      %p192 = por %p190, %p191
      %p193 = scmp.ne.s32.totalorder %s184, %s185
      %p194 = scmp.eq.s32.totalorder %s27, 0
      %p195 = por %p193, %p194
      %p196 = scmp.ne.s32.totalorder %s184, %s185
      %p197 = scmp.eq.s32.totalorder %s28, 1
      %p198 = por %p196, %p197
      %p200 = scmp.ne.s32.totalorder %s185, %s199
      %p201 = scmp.eq.s32.totalorder %s28, 0
      %p202 = por %p200, %p201
      %s204 = sadd.s32 %s203, 1
      %p207 = scmp.eq.s32.totalorder %s22, 1
      %p208 = scmp.ne.s32.totalorder %s203, %s205
      %p209 = scmp.eq.s32.totalorder %s22, 0
      %p210 = por %p208, %p209
      %p211 = scmp.ne.s32.totalorder %s203, %s205
      %p212 = scmp.eq.s32.totalorder %s27, 1
      %p213 = por %p211, %p212
      %p214 = scmp.ne.s32.totalorder %s205, %s206
      %p215 = scmp.eq.s32.totalorder %s27, 0
      %p216 = por %p214, %p215
      %p217 = scmp.ne.s32.totalorder %s205, %s206
      %p218 = scmp.eq.s32.totalorder %s28, 1
      %p219 = por %p217, %p218
      %p221 = scmp.ne.s32.totalorder %s206, %s220
      %p222 = scmp.eq.s32.totalorder %s28, 0
      %p223 = por %p221, %p222
      %s225 = sadd.s32 %s224, 1
      %p228 = scmp.eq.s32.totalorder %s22, 1
      %p229 = scmp.ne.s32.totalorder %s224, %s226
      %p230 = scmp.eq.s32.totalorder %s22, 0
      %p231 = por %p229, %p230
      %p232 = scmp.ne.s32.totalorder %s224, %s226
      %p233 = scmp.eq.s32.totalorder %s27, 1
      %p234 = por %p232, %p233
      %p235 = scmp.ne.s32.totalorder %s226, %s227
      %p236 = scmp.eq.s32.totalorder %s27, 0
      %p237 = por %p235, %p236
      %p238 = scmp.ne.s32.totalorder %s226, %s227
      %p239 = scmp.eq.s32.totalorder %s28, 1
      %p240 = por %p238, %p239
      %p242 = scmp.ne.s32.totalorder %s227, %s241
      %p243 = scmp.eq.s32.totalorder %s28, 0
      %p244 = por %p242, %p243
      %s246 = sadd.s32 %s245, 1
      %p249 = scmp.eq.s32.totalorder %s22, 1
      %p250 = scmp.ne.s32.totalorder %s245, %s247
      %p251 = scmp.eq.s32.totalorder %s22, 0
      %p252 = por %p250, %p251
      %p253 = scmp.ne.s32.totalorder %s245, %s247
      %p254 = scmp.eq.s32.totalorder %s27, 1
      %p255 = por %p253, %p254
      %p256 = scmp.ne.s32.totalorder %s247, %s248
      %p257 = scmp.eq.s32.totalorder %s27, 0
      %p258 = por %p256, %p257
      %p259 = scmp.ne.s32.totalorder %s247, %s248
      %p260 = scmp.eq.s32.totalorder %s28, 1
      %p261 = por %p259, %p260
      %p263 = scmp.ne.s32.totalorder %s248, %s262
      %p264 = scmp.eq.s32.totalorder %s28, 0
      %p265 = por %p263, %p264
      %s267 = sadd.s32 %s266, 1
      %p270 = scmp.eq.s32.totalorder %s22, 1
      %p271 = scmp.ne.s32.totalorder %s266, %s268
      %p272 = scmp.eq.s32.totalorder %s22, 0
      %p273 = por %p271, %p272
      %p274 = scmp.ne.s32.totalorder %s266, %s268
      %p275 = scmp.eq.s32.totalorder %s27, 1
      %p276 = por %p274, %p275
      %p277 = scmp.ne.s32.totalorder %s268, %s269
      %p278 = scmp.eq.s32.totalorder %s27, 0
      %p279 = por %p277, %p278
      %p280 = scmp.ne.s32.totalorder %s268, %s269
      %p281 = scmp.eq.s32.totalorder %s28, 1
      %p282 = por %p280, %p281
      %p284 = scmp.ne.s32.totalorder %s269, %s283
      %p285 = scmp.eq.s32.totalorder %s28, 0
      %p286 = por %p284, %p285
      %s288 = sadd.s32 %s287, 1
      %p291 = scmp.eq.s32.totalorder %s22, 1
      %p292 = scmp.ne.s32.totalorder %s287, %s289
      %p293 = scmp.eq.s32.totalorder %s22, 0
      %p294 = por %p292, %p293
      %p295 = scmp.ne.s32.totalorder %s287, %s289
      %p296 = scmp.eq.s32.totalorder %s27, 1
      %p297 = por %p295, %p296
      %p298 = scmp.ne.s32.totalorder %s289, %s290
      %p299 = scmp.eq.s32.totalorder %s27, 0
      %p300 = por %p298, %p299
      %p301 = scmp.ne.s32.totalorder %s289, %s290
      %p302 = scmp.eq.s32.totalorder %s28, 1
      %p303 = por %p301, %p302
      %p305 = scmp.ne.s32.totalorder %s290, %s304
      %p306 = scmp.eq.s32.totalorder %s28, 0
      %p307 = por %p305, %p306
      %s308 = ssub.s32 %s22, %s29
      %p309 = scmp.eq.s32.totalorder %s308, 0
      %s311 = sadd.s32 %s310, 1
      %s312 = scalar_select %p309, %s310, %s311
      %p315 = pneg %p309
      %p316 = scmp.eq.s32.totalorder %s22, 1
      %p317 = por %p315, %p316
      %p318 = scmp.ne.s32.totalorder %s310, %s313
      %p319 = scmp.eq.s32.totalorder %s22, 0
      %p320 = por %p318, %p319
      %p321 = scmp.ne.s32.totalorder %s310, %s313
      %p322 = scmp.eq.s32.totalorder %s27, 1
      %p323 = por %p321, %p322
      %p324 = scmp.ne.s32.totalorder %s313, %s314
      %p325 = scmp.eq.s32.totalorder %s27, 0
      %p326 = por %p324, %p325
      %p327 = scmp.ne.s32.totalorder %s313, %s314
      %p328 = scmp.eq.s32.totalorder %s28, 1
      %p329 = por %p327, %p328
      %p331 = scmp.ne.s32.totalorder %s314, %s330
      %p332 = scmp.eq.s32.totalorder %s28, 0
      %p333 = por %p331, %p332
      %p334 = scmp.le.s32.totalorder 1, %s22
      %p335 = scmp.lt.s32.totalorder %s22, 3
      %p336 = pnand %p334, %p335
      %p337 = pneg %p336
      // Predicated region
      $region9: #{tpu_custom_call.1} parent=5 // pred_check
        _
      $region10: #{tpu_custom_call.1} parent=5 // pred_check_branch
        %339 = sbr.rel (%p336) target = $region12
      $region11: #{tpu_custom_call.1} parent=5 // pred_region
        %s340 = ssub.s32 %s22, 1
        // Predicated region
        $region13: #{tpu_custom_call.1} parent=11 // pred_check
          %p341 = pneg %p69
        $region14: #{tpu_custom_call.1} parent=11 // pred_check_branch
          %343 = sbr.rel (%p341) target = $region16
        $region15: #{tpu_custom_call.1} parent=11 // pred_region
          _
        $region16: #{tpu_custom_call.1} parent=11 // pred_fallthru
          _
        // Predicated region
        $region17: #{tpu_custom_call.1} parent=11 // pred_check
          %p344 = pneg %p90
        $region18: #{tpu_custom_call.1} parent=11 // pred_check_branch
          %346 = sbr.rel (%p344) target = $region20
        $region19: #{tpu_custom_call.1} parent=11 // pred_region
          _
        $region20: #{tpu_custom_call.1} parent=11 // pred_fallthru
          _
        // Predicated region
        $region21: #{tpu_custom_call.1} parent=11 // pred_check
          %p347 = pneg %p111
        $region22: #{tpu_custom_call.1} parent=11 // pred_check_branch
          %349 = sbr.rel (%p347) target = $region24
        $region23: #{tpu_custom_call.1} parent=11 // pred_region
          _
        $region24: #{tpu_custom_call.1} parent=11 // pred_fallthru
          _
        // Predicated region
        $region25: #{tpu_custom_call.1} parent=11 // pred_check
          %p350 = pneg %p132
        $region26: #{tpu_custom_call.1} parent=11 // pred_check_branch
          %352 = sbr.rel (%p350) target = $region28
        $region27: #{tpu_custom_call.1} parent=11 // pred_region
          _
        $region28: #{tpu_custom_call.1} parent=11 // pred_fallthru
          _
        // Predicated region
        $region29: #{tpu_custom_call.1} parent=11 // pred_check
          %p353 = pneg %p153
        $region30: #{tpu_custom_call.1} parent=11 // pred_check_branch
          %355 = sbr.rel (%p353) target = $region32
        $region31: #{tpu_custom_call.1} parent=11 // pred_region
          _
        $region32: #{tpu_custom_call.1} parent=11 // pred_fallthru
          _
        // Predicated region
        $region33: #{tpu_custom_call.1} parent=11 // pred_check
          %p356 = pneg %p174
        $region34: #{tpu_custom_call.1} parent=11 // pred_check_branch
          %358 = sbr.rel (%p356) target = $region36
        $region35: #{tpu_custom_call.1} parent=11 // pred_region
          _
        $region36: #{tpu_custom_call.1} parent=11 // pred_fallthru
          _
        // Predicated region
        $region37: #{tpu_custom_call.1} parent=11 // pred_check
          %p359 = pneg %p195
        $region38: #{tpu_custom_call.1} parent=11 // pred_check_branch
          %361 = sbr.rel (%p359) target = $region40
        $region39: #{tpu_custom_call.1} parent=11 // pred_region
          _
        $region40: #{tpu_custom_call.1} parent=11 // pred_fallthru
          _
        // Predicated region
        $region41: #{tpu_custom_call.1} parent=11 // pred_check
          %p362 = pneg %p216
        $region42: #{tpu_custom_call.1} parent=11 // pred_check_branch
          %364 = sbr.rel (%p362) target = $region44
        $region43: #{tpu_custom_call.1} parent=11 // pred_region
          _
        $region44: #{tpu_custom_call.1} parent=11 // pred_fallthru
          _
        // Predicated region
        $region45: #{tpu_custom_call.1} parent=11 // pred_check
          %p365 = pneg %p237
        $region46: #{tpu_custom_call.1} parent=11 // pred_check_branch
          %367 = sbr.rel (%p365) target = $region48
        $region47: #{tpu_custom_call.1} parent=11 // pred_region
          _
        $region48: #{tpu_custom_call.1} parent=11 // pred_fallthru
          _
        // Predicated region
        $region49: #{tpu_custom_call.1} parent=11 // pred_check
          %p368 = pneg %p258
        $region50: #{tpu_custom_call.1} parent=11 // pred_check_branch
          %370 = sbr.rel (%p368) target = $region52
        $region51: #{tpu_custom_call.1} parent=11 // pred_region
          _
        $region52: #{tpu_custom_call.1} parent=11 // pred_fallthru
          _
        // Predicated region
        $region53: #{tpu_custom_call.1} parent=11 // pred_check
          %p371 = pneg %p279
        $region54: #{tpu_custom_call.1} parent=11 // pred_check_branch
          %373 = sbr.rel (%p371) target = $region56
        $region55: #{tpu_custom_call.1} parent=11 // pred_region
          _
        $region56: #{tpu_custom_call.1} parent=11 // pred_fallthru
          _
        // Predicated region
        $region57: #{tpu_custom_call.1} parent=11 // pred_check
          %p374 = pneg %p300
        $region58: #{tpu_custom_call.1} parent=11 // pred_check_branch
          %376 = sbr.rel (%p374) target = $region60
        $region59: #{tpu_custom_call.1} parent=11 // pred_region
          _
        $region60: #{tpu_custom_call.1} parent=11 // pred_fallthru
          _
      $region12: #{tpu_custom_call.1} parent=5 // pred_fallthru
        _
      %p377 = scmp.lt.s32.totalorder %s22, 2
      // Predicated region
      $region61: #{tpu_custom_call.1} parent=5 // pred_check
        %p378 = pneg %p377
      $region62: #{tpu_custom_call.1} parent=5 // pred_check_branch
        %380 = sbr.rel (%p378) target = $region64
      $region63: #{tpu_custom_call.1} parent=5 // pred_region
        // Predicated region
        $region65: #{tpu_custom_call.1} parent=63 // pred_check
          %p381 = pneg %p42
        $region66: #{tpu_custom_call.1} parent=63 // pred_check_branch
          %383 = sbr.rel (%p381) target = $region68
        $region67: #{tpu_custom_call.1} parent=63 // pred_region
          %p384 = scmp.lt.s32.totalorder %s22, 1
          %s385 = scalar_select %p384, %s22, 1
          %s386 = smul.addr %s385, 8
          %s387 = scalar_lea.vmem %s0, %s386
        $region68: #{tpu_custom_call.1} parent=63 // pred_fallthru
          _
      $region64: #{tpu_custom_call.1} parent=5 // pred_fallthru
        _
      %p388 = scmp.le.s32.totalorder 1, %s22
      %p389 = scmp.lt.s32.totalorder %s22, 3
      %p390 = pnand %p388, %p389
      %p391 = pneg %p390
      // Predicated region
      $region69: #{tpu_custom_call.1} parent=5 // pred_check
        _
      $region70: #{tpu_custom_call.1} parent=5 // pred_check_branch
        %393 = sbr.rel (%p390) target = $region72
      $region71: #{tpu_custom_call.1} parent=5 // pred_region
        %s394 = ssub.s32 %s22, 1
        %p395 = scmp.lt.s32.totalorder %s27, 1
        %s396 = scalar_select %p395, %s27, 1
        %s397 = smul.addr %s396, 8
        %s398 = scalar_lea.vmem %s0, %s397
        %p399 = pneg %p48
        %p400 = pneg %p45
        %p401 = pneg %p69
        %p402 = pneg %p66
        %p403 = pneg %p90
        %p404 = pneg %p87
        %p405 = pneg %p111
        %p406 = pneg %p108
        %p407 = pneg %p132
        %p408 = pneg %p129
        %p409 = pneg %p153
        %p410 = pneg %p150
        %p411 = pneg %p174
        %p412 = pneg %p171
        %p413 = pneg %p195
        %p414 = pneg %p192
        %p415 = pneg %p216
        %p416 = pneg %p213
        %p417 = pneg %p237
        %p418 = pneg %p234
        %p419 = pneg %p258
        %p420 = pneg %p255
        %p421 = pneg %p279
        %p422 = pneg %p276
        %p423 = pneg %p300
        %p424 = pneg %p297
        %p425 = pneg %p326
        %p426 = pneg %p323
        %s427 = sand.u32 %s313, 1
        %s428 = scalar_lea.sflag [#allocation3], %s427
        %s429 = sand.u32 %s313, 1
        %s430 = smul.addr %s429, 8
        %s431 = scalar_lea.vmem [#allocation2], %s430
        %p432 = scmp.lt.s32.totalorder %s27, 1
        %s433 = scalar_select %p432, %s27, 1
        %s434 = smul.addr %s433, 8
        %s435 = scalar_lea.vmem %s0, %s434
        %v437 = vld [vmem:[%s435] sm:$0xff]
        %v438 = vld [vmem:[%s1] sm:$0x1]
        %v439 = vld [vmem:[%s2] sm:$0x1]
        %vm440 = vcmask 261120
        %v441 = vsel %vm440, %v437, 0.0
        %442 = vadd.xlane.f32.xlu0 %v441
        %v443 = vpop.xlane.xlu0 %442
        %v444 = vrcp.pop 32.0
        %v445 = vmul.f32 %v443, %v444
        %v446 = vsub.f32 %v437, %v445
        %v447 = vmul.f32 %v446, %v446
        %v448 = vsel %vm440, %v447, 0.0
        %449 = vadd.xlane.f32.xlu0 %v448
        %v450 = vpop.xlane.xlu0 %449
        %v451 = vmul.f32 %v450, %v444
        %v452 = vadd.f32 %v451, 1e-05
        %v453 = vrsqrt.pop %v452
        %v454 = vmul.f32 %v446, %v453
        %v456 = vlaneseq
        %v457 = vshrl.u32 %v456, 7
        %v458 = vsub.s32 0, %v457
        %v459 = vrot.slane %v438, %v458
        %v461 = vmul.f32 %v454, %v459
        %v463 = vlaneseq
        %v464 = vshrl.u32 %v463, 7
        %v465 = vsub.s32 0, %v464
        %v466 = vrot.slane %v439, %v465
        %v468 = vadd.f32 %v461, %v466
        %v469 = vpack.c.bf16 %v468, %v468
        %v470 = vld [vmem:[%s3] sm:$0xf]
        %v471 = vld [vmem:[%s3 + $0x4] sm:$0xf]
        %v472 = vld [vmem:[%s3 + $0x8] sm:$0xf]
        %v473 = vld [vmem:[%s3 + $0xc] sm:$0xf]
        %v474 = vld [vmem:[%s4] sm:$0x1]
        %v476 = vlaneseq
        %v477 = vshrl.u32 %v476, 7
        %v478 = vsub.s32 0, %v477
        %v479 = vrot.slane %v474, %v478
        %v485 = vunpack.c.l.b16 %v470
        %v486 = vunpack.c.l.b16 %v471
        %v487 = vunpack.c.l.b16 %v472
        %v488 = vunpack.c.l.b16 %v473
        %v489 = vpack.c.b16 %v486, %v485
        %v490 = vpack.c.b16 %v488, %v487
        %v494 = vsel %vm440, %v469, 0
        %496 = vmatprep.subr.bf16.mxu0 0
        %497 = vmatpush1.bf16.msra.mxu0 0
        %498 = vmatprep.subr.bf16.mxu0 0
        %499 = vmatpush1.bf16.msra.mxu0 0
        %500 = vmatprep.subr.bf16.mxu0 0
        %501 = vmatpush1.bf16.msra.mxu0 0
        %502 = vmatprep.subr.bf16.mxu0 0
        %503 = vmatpush1.bf16.msra.mxu0 0
        %504 = vmatprep.subr.bf16.mxu0 0
        %505 = vmatpush1.bf16.msra.mxu0 0
        %506 = vmatprep.subr.bf16.mxu0 0
        %507 = vmatpush1.bf16.msra.mxu0 0
        %508 = vmatprep.subr.bf16.mxu0 0
        %509 = vmatpush1.bf16.msra.mxu0 %v490
        %510 = vmatprep.subr.bf16.mxu0 0
        %511 = vmatpush1.bf16.msra.mxu0 %v489
        %512 = vmatprep.subr.bf16.mxu0 0
        %513 = vmatpush2.bf16.msra.mxu0 0
        %514 = vmatprep.subr.bf16.mxu0 0
        %515 = vmatpush2.bf16.msra.mxu0 0
        %516 = vmatprep.subr.bf16.mxu0 0
        %517 = vmatpush2.bf16.msra.mxu0 0
        %518 = vmatprep.subr.bf16.mxu0 0
        %519 = vmatpush2.bf16.msra.mxu0 0
        %520 = vmatprep.subr.bf16.mxu0 0
        %521 = vmatpush2.bf16.msra.mxu0 0
        %522 = vmatprep.subr.bf16.mxu0 0
        %523 = vmatpush2.bf16.msra.mxu0 0
        %524 = vmatprep.subr.bf16.mxu0 0
        %525 = vmatpush2.bf16.msra.mxu0 0
        %526 = vmatprep.subr.bf16.mxu0 0
        %527 = vmatpush2.bf16.msra.mxu0 0
        %528 = vmatprep.mubr.bf16.mxu0 0
        %529 = vmatmul.mubr.bf16.gmra.mxu0 %v494
        %v530 = vpop.f32.mrf.mxu0
        %v531 = vadd.f32 %v479, %v530
        %v532 = vpop.f32.mrf.mxu0
        %v533 = vpop.f32.mrf.mxu0
        %v534 = vpop.f32.mrf.mxu0
        %535 = vdwg.mxu0
        %537 = vrot.lane.b32.xlu0 %v531, 120
        %v538 = vpop.permute.xlu0 %537
        %540 = vrot.lane.b32.xlu0 %v531, 112
        %v541 = vpop.permute.xlu0 %540
        %543 = vrot.lane.b32.xlu0 %v531, 104
        %v544 = vpop.permute.xlu0 %543
        %v546 = vmul.f32 %v531, 0.35355338
        %v547 = vmul.f32 %v538, 0.35355338
        %v548 = vmul.f32 %v541, 0.35355338
        %v549 = vmul.f32 %v544, 0.35355338
        %v550 = vlaneseq
        %v551 = vshrl.u32 %v550, 7
        %v552 = vlaneseq
        %v553 = vand.u32 %v552, 127
        %vm554 = vcmp.gt.s32.totalorder %v553, %v551
        %v555 = vsel %vm554, -1e+30, 0.0
        %v556 = vpack.c.bf16 %v546, %v546
        %v557 = vpack.c.bf16 %v547, %v547
        %v558 = vpack.c.bf16 %v548, %v548
        %v559 = vpack.c.bf16 %v549, %v549
        %v560 = vpack.c.bf16 %v531, %v531
        %v561 = vpack.c.bf16 %v538, %v538
        %v562 = vpack.c.bf16 %v541, %v541
        %v563 = vpack.c.bf16 %v544, %v544
        %565 = vrot.lane.b32.xlu0 %v560, 96
        %v566 = vpop.permute.xlu0 %565
        %vm567 = vcmask 64512
        %v569 = vsel %vm567, %v556, 0
        %v572 = vsel %vm567, %v566, 0
        %574 = vmatprep.subr.bf16.mxu0 0
        %575 = vmatpush1.bf16.xpose.msra.mxu0 0
        %576 = vmatprep.subr.bf16.mxu0 0
        %577 = vmatpush1.bf16.xpose.msra.mxu0 0
        %578 = vmatprep.subr.bf16.mxu0 0
        %579 = vmatpush1.bf16.xpose.msra.mxu0 0
        %580 = vmatprep.subr.bf16.mxu0 0
        %581 = vmatpush1.bf16.xpose.msra.mxu0 0
        %582 = vmatprep.subr.bf16.mxu0 0
        %583 = vmatpush1.bf16.xpose.msra.mxu0 0
        %584 = vmatprep.subr.bf16.mxu0 0
        %585 = vmatpush1.bf16.xpose.msra.mxu0 0
        %586 = vmatprep.subr.bf16.mxu0 0
        %587 = vmatpush1.bf16.xpose.msra.mxu0 0
        %588 = vmatprep.subr.bf16.mxu0 0
        %589 = vmatpush1.bf16.xpose.msra.mxu0 %v572
        %590 = vmatprep.subr.bf16.mxu0 0
        %591 = vmatpush2.bf16.xpose.msra.mxu0 0
        %592 = vmatprep.subr.bf16.mxu0 0
        %593 = vmatpush2.bf16.xpose.msra.mxu0 0
        %594 = vmatprep.subr.bf16.mxu0 0
        %595 = vmatpush2.bf16.xpose.msra.mxu0 0
        %596 = vmatprep.subr.bf16.mxu0 0
        %597 = vmatpush2.bf16.xpose.msra.mxu0 0
        %598 = vmatprep.subr.bf16.mxu0 0
        %599 = vmatpush2.bf16.xpose.msra.mxu0 0
        %600 = vmatprep.subr.bf16.mxu0 0
        %601 = vmatpush2.bf16.xpose.msra.mxu0 0
        %602 = vmatprep.subr.bf16.mxu0 0
        %603 = vmatpush2.bf16.xpose.msra.mxu0 0
        %604 = vmatprep.subr.bf16.mxu0 0
        %605 = vmatpush2.bf16.xpose.msra.mxu0 0
        %606 = vmatprep.mubr.bf16.mxu0 0
        %607 = vmatmul.mubr.bf16.gmra.mxu0 %v569
        %v608 = vpop.f32.mrf.mxu0
        %v609 = vadd.f32 %v555, %v608
        %v610 = vpop.f32.mrf.mxu0
        %v611 = vpop.f32.mrf.mxu0
        %v612 = vpop.f32.mrf.mxu0
        %613 = vdwg.mxu0
        %615 = vrot.lane.b32.xlu0 %v561, 96
        %v616 = vpop.permute.xlu0 %615
        %v618 = vsel %vm567, %v557, 0
        %v621 = vsel %vm567, %v616, 0
        %623 = vmatprep.subr.bf16.mxu0 0
        %624 = vmatpush1.bf16.xpose.msra.mxu0 0
        %625 = vmatprep.subr.bf16.mxu0 0
        %626 = vmatpush1.bf16.xpose.msra.mxu0 0
        %627 = vmatprep.subr.bf16.mxu0 0
        %628 = vmatpush1.bf16.xpose.msra.mxu0 0
        %629 = vmatprep.subr.bf16.mxu0 0
        %630 = vmatpush1.bf16.xpose.msra.mxu0 0
        %631 = vmatprep.subr.bf16.mxu0 0
        %632 = vmatpush1.bf16.xpose.msra.mxu0 0
        %633 = vmatprep.subr.bf16.mxu0 0
        %634 = vmatpush1.bf16.xpose.msra.mxu0 0
        %635 = vmatprep.subr.bf16.mxu0 0
        %636 = vmatpush1.bf16.xpose.msra.mxu0 0
        %637 = vmatprep.subr.bf16.mxu0 0
        %638 = vmatpush1.bf16.xpose.msra.mxu0 %v621
        %639 = vmatprep.subr.bf16.mxu0 0
        %640 = vmatpush2.bf16.xpose.msra.mxu0 0
        %641 = vmatprep.subr.bf16.mxu0 0
        %642 = vmatpush2.bf16.xpose.msra.mxu0 0
        %643 = vmatprep.subr.bf16.mxu0 0
        %644 = vmatpush2.bf16.xpose.msra.mxu0 0
        %645 = vmatprep.subr.bf16.mxu0 0
        %646 = vmatpush2.bf16.xpose.msra.mxu0 0
        %647 = vmatprep.subr.bf16.mxu0 0
        %648 = vmatpush2.bf16.xpose.msra.mxu0 0
        %649 = vmatprep.subr.bf16.mxu0 0
        %650 = vmatpush2.bf16.xpose.msra.mxu0 0
        %651 = vmatprep.subr.bf16.mxu0 0
        %652 = vmatpush2.bf16.xpose.msra.mxu0 0
        %653 = vmatprep.subr.bf16.mxu0 0
        %654 = vmatpush2.bf16.xpose.msra.mxu0 0
        %655 = vmatprep.mubr.bf16.mxu0 0
        %656 = vmatmul.mubr.bf16.gmra.mxu0 %v618
        %v657 = vpop.f32.mrf.mxu0
        %v658 = vadd.f32 %v555, %v657
        %v659 = vpop.f32.mrf.mxu0
        %v660 = vpop.f32.mrf.mxu0
        %v661 = vpop.f32.mrf.mxu0
        %662 = vdwg.mxu0
        %664 = vrot.lane.b32.xlu0 %v562, 96
        %v665 = vpop.permute.xlu0 %664
        %v667 = vsel %vm567, %v558, 0
        %v670 = vsel %vm567, %v665, 0
        %672 = vmatprep.subr.bf16.mxu0 0
        %673 = vmatpush1.bf16.xpose.msra.mxu0 0
        %674 = vmatprep.subr.bf16.mxu0 0
        %675 = vmatpush1.bf16.xpose.msra.mxu0 0
        %676 = vmatprep.subr.bf16.mxu0 0
        %677 = vmatpush1.bf16.xpose.msra.mxu0 0
        %678 = vmatprep.subr.bf16.mxu0 0
        %679 = vmatpush1.bf16.xpose.msra.mxu0 0
        %680 = vmatprep.subr.bf16.mxu0 0
        %681 = vmatpush1.bf16.xpose.msra.mxu0 0
        %682 = vmatprep.subr.bf16.mxu0 0
        %683 = vmatpush1.bf16.xpose.msra.mxu0 0
        %684 = vmatprep.subr.bf16.mxu0 0
        %685 = vmatpush1.bf16.xpose.msra.mxu0 0
        %686 = vmatprep.subr.bf16.mxu0 0
        %687 = vmatpush1.bf16.xpose.msra.mxu0 %v670
        %688 = vmatprep.subr.bf16.mxu0 0
        %689 = vmatpush2.bf16.xpose.msra.mxu0 0
        %690 = vmatprep.subr.bf16.mxu0 0
        %691 = vmatpush2.bf16.xpose.msra.mxu0 0
        %692 = vmatprep.subr.bf16.mxu0 0
        %693 = vmatpush2.bf16.xpose.msra.mxu0 0
        %694 = vmatprep.subr.bf16.mxu0 0
        %695 = vmatpush2.bf16.xpose.msra.mxu0 0
        %696 = vmatprep.subr.bf16.mxu0 0
        %697 = vmatpush2.bf16.xpose.msra.mxu0 0
        %698 = vmatprep.subr.bf16.mxu0 0
        %699 = vmatpush2.bf16.xpose.msra.mxu0 0
        %700 = vmatprep.subr.bf16.mxu0 0
        %701 = vmatpush2.bf16.xpose.msra.mxu0 0
        %702 = vmatprep.subr.bf16.mxu0 0
        %703 = vmatpush2.bf16.xpose.msra.mxu0 0
        %704 = vmatprep.mubr.bf16.mxu0 0
        %705 = vmatmul.mubr.bf16.gmra.mxu0 %v667
        %v706 = vpop.f32.mrf.mxu0
        %v707 = vadd.f32 %v555, %v706
        %v708 = vpop.f32.mrf.mxu0
        %v709 = vpop.f32.mrf.mxu0
        %v710 = vpop.f32.mrf.mxu0
        %711 = vdwg.mxu0
        %713 = vrot.lane.b32.xlu0 %v563, 96
        %v714 = vpop.permute.xlu0 %713
        %v716 = vsel %vm567, %v559, 0
        %v719 = vsel %vm567, %v714, 0
        %721 = vmatprep.subr.bf16.mxu0 0
        %722 = vmatpush1.bf16.xpose.msra.mxu0 0
        %723 = vmatprep.subr.bf16.mxu0 0
        %724 = vmatpush1.bf16.xpose.msra.mxu0 0
        %725 = vmatprep.subr.bf16.mxu0 0
        %726 = vmatpush1.bf16.xpose.msra.mxu0 0
        %727 = vmatprep.subr.bf16.mxu0 0
        %728 = vmatpush1.bf16.xpose.msra.mxu0 0
        %729 = vmatprep.subr.bf16.mxu0 0
        %730 = vmatpush1.bf16.xpose.msra.mxu0 0
        %731 = vmatprep.subr.bf16.mxu0 0
        %732 = vmatpush1.bf16.xpose.msra.mxu0 0
        %733 = vmatprep.subr.bf16.mxu0 0
        %734 = vmatpush1.bf16.xpose.msra.mxu0 0
        %735 = vmatprep.subr.bf16.mxu0 0
        %736 = vmatpush1.bf16.xpose.msra.mxu0 %v719
        %737 = vmatprep.subr.bf16.mxu0 0
        %738 = vmatpush2.bf16.xpose.msra.mxu0 0
        %739 = vmatprep.subr.bf16.mxu0 0
        %740 = vmatpush2.bf16.xpose.msra.mxu0 0
        %741 = vmatprep.subr.bf16.mxu0 0
        %742 = vmatpush2.bf16.xpose.msra.mxu0 0
        %743 = vmatprep.subr.bf16.mxu0 0
        %744 = vmatpush2.bf16.xpose.msra.mxu0 0
        %745 = vmatprep.subr.bf16.mxu0 0
        %746 = vmatpush2.bf16.xpose.msra.mxu0 0
        %747 = vmatprep.subr.bf16.mxu0 0
        %748 = vmatpush2.bf16.xpose.msra.mxu0 0
        %749 = vmatprep.subr.bf16.mxu0 0
        %750 = vmatpush2.bf16.xpose.msra.mxu0 0
        %751 = vmatprep.subr.bf16.mxu0 0
        %752 = vmatpush2.bf16.xpose.msra.mxu0 0
        %753 = vmatprep.mubr.bf16.mxu0 0
        %754 = vmatmul.mubr.bf16.gmra.mxu0 %v716
        %v755 = vpop.f32.mrf.mxu0
        %v756 = vadd.f32 %v555, %v755
        %v757 = vpop.f32.mrf.mxu0
        %v758 = vpop.f32.mrf.mxu0
        %v759 = vpop.f32.mrf.mxu0
        %760 = vdwg.mxu0
        %v761 = vsel %vm567, %v609, -inf
        %762 = vmax.xlane.f32.xlu0 %v761
        %v763 = vpop.xlane.xlu0 %762
        %v764 = vsel %vm567, %v658, -inf
        %765 = vmax.xlane.f32.xlu0 %v764
        %v766 = vpop.xlane.xlu0 %765
        %v767 = vsel %vm567, %v707, -inf
        %768 = vmax.xlane.f32.xlu0 %v767
        %v769 = vpop.xlane.xlu0 %768
        %v770 = vsel %vm567, %v756, -inf
        %771 = vmax.xlane.f32.xlu0 %v770
        %v772 = vpop.xlane.xlu0 %771
        %v773 = vsub.f32 %v609, %v763
        %v774 = vsub.f32 %v658, %v766
        %v775 = vsub.f32 %v707, %v769
        %v776 = vsub.f32 %v756, %v772
        %v777 = vmul.f32 %v773, 1.442695
        %v778 = vpow.pop %v777
        %v779 = vmul.f32 %v774, 1.442695
        %v780 = vpow.pop %v779
        %v781 = vmul.f32 %v775, 1.442695
        %v782 = vpow.pop %v781
        %v783 = vmul.f32 %v776, 1.442695
        %v784 = vpow.pop %v783
        %v785 = vsel %vm567, %v778, 0.0
        %786 = vadd.xlane.f32.xlu0 %v785
        %v787 = vpop.xlane.xlu0 %786
        %v788 = vsel %vm567, %v780, 0.0
        %789 = vadd.xlane.f32.xlu0 %v788
        %v790 = vpop.xlane.xlu0 %789
        %v791 = vsel %vm567, %v782, 0.0
        %792 = vadd.xlane.f32.xlu0 %v791
        %v793 = vpop.xlane.xlu0 %792
        %v794 = vsel %vm567, %v784, 0.0
        %795 = vadd.xlane.f32.xlu0 %v794
        %v796 = vpop.xlane.xlu0 %795
        %v797 = vrcp.pop %v787
        %v798 = vrcp.pop %v790
        %v799 = vrcp.pop %v793
        %v800 = vrcp.pop %v796
        %v801 = vmul.f32 %v778, %v797
        %v802 = vmul.f32 %v780, %v798
        %v803 = vmul.f32 %v782, %v799
        %v804 = vmul.f32 %v784, %v800
        %v805 = vpack.c.bf16 %v801, %v801
        %v806 = vpack.c.bf16 %v802, %v802
        %v807 = vpack.c.bf16 %v803, %v803
        %v808 = vpack.c.bf16 %v804, %v804
        %809 = vrot.lane.b32.xlu0 %v560, 64
        %v810 = vpop.permute.xlu0 %809
        %v812 = vsel %vm567, %v805, 0
        %vm814 = vcmask 1043456
        %v816 = vsel %vm814, %v810, 0
        %818 = vmatprep.subr.bf16.mxu0 0
        %819 = vmatpush1.bf16.msra.mxu0 0
        %820 = vmatprep.subr.bf16.mxu0 0
        %821 = vmatpush1.bf16.msra.mxu0 0
        %822 = vmatprep.subr.bf16.mxu0 0
        %823 = vmatpush1.bf16.msra.mxu0 0
        %824 = vmatprep.subr.bf16.mxu0 0
        %825 = vmatpush1.bf16.msra.mxu0 0
        %826 = vmatprep.subr.bf16.mxu0 0
        %827 = vmatpush1.bf16.msra.mxu0 0
        %828 = vmatprep.subr.bf16.mxu0 0
        %829 = vmatpush1.bf16.msra.mxu0 0
        %830 = vmatprep.subr.bf16.mxu0 0
        %831 = vmatpush1.bf16.msra.mxu0 0
        %832 = vmatprep.subr.bf16.mxu0 0
        %833 = vmatpush1.bf16.msra.mxu0 %v816
        %834 = vmatprep.subr.bf16.mxu0 0
        %835 = vmatpush2.bf16.msra.mxu0 0
        %836 = vmatprep.subr.bf16.mxu0 0
        %837 = vmatpush2.bf16.msra.mxu0 0
        %838 = vmatprep.subr.bf16.mxu0 0
        %839 = vmatpush2.bf16.msra.mxu0 0
        %840 = vmatprep.subr.bf16.mxu0 0
        %841 = vmatpush2.bf16.msra.mxu0 0
        %842 = vmatprep.subr.bf16.mxu0 0
        %843 = vmatpush2.bf16.msra.mxu0 0
        %844 = vmatprep.subr.bf16.mxu0 0
        %845 = vmatpush2.bf16.msra.mxu0 0
        %846 = vmatprep.subr.bf16.mxu0 0
        %847 = vmatpush2.bf16.msra.mxu0 0
        %848 = vmatprep.subr.bf16.mxu0 0
        %849 = vmatpush2.bf16.msra.mxu0 0
        %850 = vmatprep.mubr.bf16.mxu0 0
        %851 = vmatmul.mubr.bf16.gmra.mxu0 %v812
        %v852 = vpop.f32.mrf.mxu0
        %v853 = vadd.f32 0.0, %v852
        %v854 = vpop.f32.mrf.mxu0
        %v855 = vpop.f32.mrf.mxu0
        %v856 = vpop.f32.mrf.mxu0
        %857 = vdwg.mxu0
        %858 = vrot.lane.b32.xlu0 %v561, 64
        %v859 = vpop.permute.xlu0 %858
        %v861 = vsel %vm567, %v806, 0
        %v864 = vsel %vm814, %v859, 0
        %866 = vmatprep.subr.bf16.mxu0 0
        %867 = vmatpush1.bf16.msra.mxu0 0
        %868 = vmatprep.subr.bf16.mxu0 0
        %869 = vmatpush1.bf16.msra.mxu0 0
        %870 = vmatprep.subr.bf16.mxu0 0
        %871 = vmatpush1.bf16.msra.mxu0 0
        %872 = vmatprep.subr.bf16.mxu0 0
        %873 = vmatpush1.bf16.msra.mxu0 0
        %874 = vmatprep.subr.bf16.mxu0 0
        %875 = vmatpush1.bf16.msra.mxu0 0
        %876 = vmatprep.subr.bf16.mxu0 0
        %877 = vmatpush1.bf16.msra.mxu0 0
        %878 = vmatprep.subr.bf16.mxu0 0
        %879 = vmatpush1.bf16.msra.mxu0 0
        %880 = vmatprep.subr.bf16.mxu0 0
        %881 = vmatpush1.bf16.msra.mxu0 %v864
        %882 = vmatprep.subr.bf16.mxu0 0
        %883 = vmatpush2.bf16.msra.mxu0 0
        %884 = vmatprep.subr.bf16.mxu0 0
        %885 = vmatpush2.bf16.msra.mxu0 0
        %886 = vmatprep.subr.bf16.mxu0 0
        %887 = vmatpush2.bf16.msra.mxu0 0
        %888 = vmatprep.subr.bf16.mxu0 0
        %889 = vmatpush2.bf16.msra.mxu0 0
        %890 = vmatprep.subr.bf16.mxu0 0
        %891 = vmatpush2.bf16.msra.mxu0 0
        %892 = vmatprep.subr.bf16.mxu0 0
        %893 = vmatpush2.bf16.msra.mxu0 0
        %894 = vmatprep.subr.bf16.mxu0 0
        %895 = vmatpush2.bf16.msra.mxu0 0
        %896 = vmatprep.subr.bf16.mxu0 0
        %897 = vmatpush2.bf16.msra.mxu0 0
        %898 = vmatprep.mubr.bf16.mxu0 0
        %899 = vmatmul.mubr.bf16.gmra.mxu0 %v861
        %v900 = vpop.f32.mrf.mxu0
        %v901 = vadd.f32 0.0, %v900
        %v902 = vpop.f32.mrf.mxu0
        %v903 = vpop.f32.mrf.mxu0
        %v904 = vpop.f32.mrf.mxu0
        %905 = vdwg.mxu0
        %906 = vrot.lane.b32.xlu0 %v562, 64
        %v907 = vpop.permute.xlu0 %906
        %v909 = vsel %vm567, %v807, 0
        %v912 = vsel %vm814, %v907, 0
        %914 = vmatprep.subr.bf16.mxu0 0
        %915 = vmatpush1.bf16.msra.mxu0 0
        %916 = vmatprep.subr.bf16.mxu0 0
        %917 = vmatpush1.bf16.msra.mxu0 0
        %918 = vmatprep.subr.bf16.mxu0 0
        %919 = vmatpush1.bf16.msra.mxu0 0
        %920 = vmatprep.subr.bf16.mxu0 0
        %921 = vmatpush1.bf16.msra.mxu0 0
        %922 = vmatprep.subr.bf16.mxu0 0
        %923 = vmatpush1.bf16.msra.mxu0 0
        %924 = vmatprep.subr.bf16.mxu0 0
        %925 = vmatpush1.bf16.msra.mxu0 0
        %926 = vmatprep.subr.bf16.mxu0 0
        %927 = vmatpush1.bf16.msra.mxu0 0
        %928 = vmatprep.subr.bf16.mxu0 0
        %929 = vmatpush1.bf16.msra.mxu0 %v912
        %930 = vmatprep.subr.bf16.mxu0 0
        %931 = vmatpush2.bf16.msra.mxu0 0
        %932 = vmatprep.subr.bf16.mxu0 0
        %933 = vmatpush2.bf16.msra.mxu0 0
        %934 = vmatprep.subr.bf16.mxu0 0
        %935 = vmatpush2.bf16.msra.mxu0 0
        %936 = vmatprep.subr.bf16.mxu0 0
        %937 = vmatpush2.bf16.msra.mxu0 0
        %938 = vmatprep.subr.bf16.mxu0 0
        %939 = vmatpush2.bf16.msra.mxu0 0
        %940 = vmatprep.subr.bf16.mxu0 0
        %941 = vmatpush2.bf16.msra.mxu0 0
        %942 = vmatprep.subr.bf16.mxu0 0
        %943 = vmatpush2.bf16.msra.mxu0 0
        %944 = vmatprep.subr.bf16.mxu0 0
        %945 = vmatpush2.bf16.msra.mxu0 0
        %946 = vmatprep.mubr.bf16.mxu0 0
        %947 = vmatmul.mubr.bf16.gmra.mxu0 %v909
        %v948 = vpop.f32.mrf.mxu0
        %v949 = vadd.f32 0.0, %v948
        %v950 = vpop.f32.mrf.mxu0
        %v951 = vpop.f32.mrf.mxu0
        %v952 = vpop.f32.mrf.mxu0
        %953 = vdwg.mxu0
        %954 = vrot.lane.b32.xlu0 %v563, 64
        %v955 = vpop.permute.xlu0 %954
        %v957 = vsel %vm567, %v808, 0
        %v960 = vsel %vm814, %v955, 0
        %962 = vmatprep.subr.bf16.mxu0 0
        %963 = vmatpush1.bf16.msra.mxu0 0
        %964 = vmatprep.subr.bf16.mxu0 0
        %965 = vmatpush1.bf16.msra.mxu0 0
        %966 = vmatprep.subr.bf16.mxu0 0
        %967 = vmatpush1.bf16.msra.mxu0 0
        %968 = vmatprep.subr.bf16.mxu0 0
        %969 = vmatpush1.bf16.msra.mxu0 0
        %970 = vmatprep.subr.bf16.mxu0 0
        %971 = vmatpush1.bf16.msra.mxu0 0
        %972 = vmatprep.subr.bf16.mxu0 0
        %973 = vmatpush1.bf16.msra.mxu0 0
        %974 = vmatprep.subr.bf16.mxu0 0
        %975 = vmatpush1.bf16.msra.mxu0 0
        %976 = vmatprep.subr.bf16.mxu0 0
        %977 = vmatpush1.bf16.msra.mxu0 %v960
        %978 = vmatprep.subr.bf16.mxu0 0
        %979 = vmatpush2.bf16.msra.mxu0 0
        %980 = vmatprep.subr.bf16.mxu0 0
        %981 = vmatpush2.bf16.msra.mxu0 0
        %982 = vmatprep.subr.bf16.mxu0 0
        %983 = vmatpush2.bf16.msra.mxu0 0
        %984 = vmatprep.subr.bf16.mxu0 0
        %985 = vmatpush2.bf16.msra.mxu0 0
        %986 = vmatprep.subr.bf16.mxu0 0
        %987 = vmatpush2.bf16.msra.mxu0 0
        %988 = vmatprep.subr.bf16.mxu0 0
        %989 = vmatpush2.bf16.msra.mxu0 0
        %990 = vmatprep.subr.bf16.mxu0 0
        %991 = vmatpush2.bf16.msra.mxu0 0
        %992 = vmatprep.subr.bf16.mxu0 0
        %993 = vmatpush2.bf16.msra.mxu0 0
        %994 = vmatprep.mubr.bf16.mxu0 0
        %995 = vmatmul.mubr.bf16.gmra.mxu0 %v957
        %v996 = vpop.f32.mrf.mxu0
        %v997 = vadd.f32 0.0, %v996
        %v998 = vpop.f32.mrf.mxu0
        %v999 = vpop.f32.mrf.mxu0
        %v1000 = vpop.f32.mrf.mxu0
        %1001 = vdwg.mxu0
        %v1002 = vpack.c.bf16 %v853, %v853
        %v1003 = vpack.c.bf16 %v901, %v901
        %v1004 = vpack.c.bf16 %v949, %v949
        %v1005 = vpack.c.bf16 %v997, %v997
        %v1006 = vld [vmem:[%s5] sm:$0xf]
        %v1007 = vld [vmem:[%s5 + $0x4] sm:$0xf]
        %v1008 = vld [vmem:[%s5 + $0x8] sm:$0xf]
        %v1009 = vld [vmem:[%s5 + $0xc] sm:$0xf]
        %v1011 = vsel %vm567, %v1002, 0
        %v1014 = vsel %vm814, %v1006, 0
        %1016 = vmatprep.subr.bf16.mxu0 0
        %1017 = vmatpush1.bf16.msra.mxu0 0
        %1018 = vmatprep.subr.bf16.mxu0 0
        %1019 = vmatpush1.bf16.msra.mxu0 0
        %1020 = vmatprep.subr.bf16.mxu0 0
        %1021 = vmatpush1.bf16.msra.mxu0 0
        %1022 = vmatprep.subr.bf16.mxu0 0
        %1023 = vmatpush1.bf16.msra.mxu0 0
        %1024 = vmatprep.subr.bf16.mxu0 0
        %1025 = vmatpush1.bf16.msra.mxu0 0
        %1026 = vmatprep.subr.bf16.mxu0 0
        %1027 = vmatpush1.bf16.msra.mxu0 0
        %1028 = vmatprep.subr.bf16.mxu0 0
        %1029 = vmatpush1.bf16.msra.mxu0 0
        %1030 = vmatprep.subr.bf16.mxu0 0
        %1031 = vmatpush1.bf16.msra.mxu0 %v1014
        %1032 = vmatprep.subr.bf16.mxu0 0
        %1033 = vmatpush2.bf16.msra.mxu0 0
        %1034 = vmatprep.subr.bf16.mxu0 0
        %1035 = vmatpush2.bf16.msra.mxu0 0
        %1036 = vmatprep.subr.bf16.mxu0 0
        %1037 = vmatpush2.bf16.msra.mxu0 0
        %1038 = vmatprep.subr.bf16.mxu0 0
        %1039 = vmatpush2.bf16.msra.mxu0 0
        %1040 = vmatprep.subr.bf16.mxu0 0
        %1041 = vmatpush2.bf16.msra.mxu0 0
        %1042 = vmatprep.subr.bf16.mxu0 0
        %1043 = vmatpush2.bf16.msra.mxu0 0
        %1044 = vmatprep.subr.bf16.mxu0 0
        %1045 = vmatpush2.bf16.msra.mxu0 0
        %1046 = vmatprep.subr.bf16.mxu0 0
        %1047 = vmatpush2.bf16.msra.mxu0 0
        %1048 = vmatprep.mubr.bf16.mxu0 0
        %1049 = vmatmul.mubr.bf16.gmra.mxu0 %v1011
        %v1050 = vpop.f32.mrf.mxu0
        %v1051 = vadd.f32 0.0, %v1050
        %v1052 = vpop.f32.mrf.mxu0
        %v1053 = vpop.f32.mrf.mxu0
        %v1054 = vpop.f32.mrf.mxu0
        %1055 = vdwg.mxu0
        %v1057 = vsel %vm567, %v1003, 0
        %v1060 = vsel %vm814, %v1007, 0
        %1062 = vmatprep.subr.bf16.mxu0 0
        %1063 = vmatpush1.bf16.msra.mxu0 0
        %1064 = vmatprep.subr.bf16.mxu0 0
        %1065 = vmatpush1.bf16.msra.mxu0 0
        %1066 = vmatprep.subr.bf16.mxu0 0
        %1067 = vmatpush1.bf16.msra.mxu0 0
        %1068 = vmatprep.subr.bf16.mxu0 0
        %1069 = vmatpush1.bf16.msra.mxu0 0
        %1070 = vmatprep.subr.bf16.mxu0 0
        %1071 = vmatpush1.bf16.msra.mxu0 0
        %1072 = vmatprep.subr.bf16.mxu0 0
        %1073 = vmatpush1.bf16.msra.mxu0 0
        %1074 = vmatprep.subr.bf16.mxu0 0
        %1075 = vmatpush1.bf16.msra.mxu0 0
        %1076 = vmatprep.subr.bf16.mxu0 0
        %1077 = vmatpush1.bf16.msra.mxu0 %v1060
        %1078 = vmatprep.subr.bf16.mxu0 0
        %1079 = vmatpush2.bf16.msra.mxu0 0
        %1080 = vmatprep.subr.bf16.mxu0 0
        %1081 = vmatpush2.bf16.msra.mxu0 0
        %1082 = vmatprep.subr.bf16.mxu0 0
        %1083 = vmatpush2.bf16.msra.mxu0 0
        %1084 = vmatprep.subr.bf16.mxu0 0
        %1085 = vmatpush2.bf16.msra.mxu0 0
        %1086 = vmatprep.subr.bf16.mxu0 0
        %1087 = vmatpush2.bf16.msra.mxu0 0
        %1088 = vmatprep.subr.bf16.mxu0 0
        %1089 = vmatpush2.bf16.msra.mxu0 0
        %1090 = vmatprep.subr.bf16.mxu0 0
        %1091 = vmatpush2.bf16.msra.mxu0 0
        %1092 = vmatprep.subr.bf16.mxu0 0
        %1093 = vmatpush2.bf16.msra.mxu0 0
        %1094 = vmatprep.mubr.bf16.mxu0 0
        %1095 = vmatmul.mubr.bf16.gmra.mxu0 %v1057
        %v1096 = vpop.f32.mrf.mxu0
        %v1097 = vadd.f32 0.0, %v1096
        %v1098 = vpop.f32.mrf.mxu0
        %v1099 = vpop.f32.mrf.mxu0
        %v1100 = vpop.f32.mrf.mxu0
        %1101 = vdwg.mxu0
        %v1103 = vsel %vm567, %v1004, 0
        %v1106 = vsel %vm814, %v1008, 0
        %1108 = vmatprep.subr.bf16.mxu0 0
        %1109 = vmatpush1.bf16.msra.mxu0 0
        %1110 = vmatprep.subr.bf16.mxu0 0
        %1111 = vmatpush1.bf16.msra.mxu0 0
        %1112 = vmatprep.subr.bf16.mxu0 0
        %1113 = vmatpush1.bf16.msra.mxu0 0
        %1114 = vmatprep.subr.bf16.mxu0 0
        %1115 = vmatpush1.bf16.msra.mxu0 0
        %1116 = vmatprep.subr.bf16.mxu0 0
        %1117 = vmatpush1.bf16.msra.mxu0 0
        %1118 = vmatprep.subr.bf16.mxu0 0
        %1119 = vmatpush1.bf16.msra.mxu0 0
        %1120 = vmatprep.subr.bf16.mxu0 0
        %1121 = vmatpush1.bf16.msra.mxu0 0
        %1122 = vmatprep.subr.bf16.mxu0 0
        %1123 = vmatpush1.bf16.msra.mxu0 %v1106
        %1124 = vmatprep.subr.bf16.mxu0 0
        %1125 = vmatpush2.bf16.msra.mxu0 0
        %1126 = vmatprep.subr.bf16.mxu0 0
        %1127 = vmatpush2.bf16.msra.mxu0 0
        %1128 = vmatprep.subr.bf16.mxu0 0
        %1129 = vmatpush2.bf16.msra.mxu0 0
        %1130 = vmatprep.subr.bf16.mxu0 0
        %1131 = vmatpush2.bf16.msra.mxu0 0
        %1132 = vmatprep.subr.bf16.mxu0 0
        %1133 = vmatpush2.bf16.msra.mxu0 0
        %1134 = vmatprep.subr.bf16.mxu0 0
        %1135 = vmatpush2.bf16.msra.mxu0 0
        %1136 = vmatprep.subr.bf16.mxu0 0
        %1137 = vmatpush2.bf16.msra.mxu0 0
        %1138 = vmatprep.subr.bf16.mxu0 0
        %1139 = vmatpush2.bf16.msra.mxu0 0
        %1140 = vmatprep.mubr.bf16.mxu0 0
        %1141 = vmatmul.mubr.bf16.gmra.mxu0 %v1103
        %v1142 = vpop.f32.mrf.mxu0
        %v1143 = vadd.f32 0.0, %v1142
        %v1144 = vpop.f32.mrf.mxu0
        %v1145 = vpop.f32.mrf.mxu0
        %v1146 = vpop.f32.mrf.mxu0
        %1147 = vdwg.mxu0
        %v1149 = vsel %vm567, %v1005, 0
        %v1152 = vsel %vm814, %v1009, 0
        %1154 = vmatprep.subr.bf16.mxu0 0
        %1155 = vmatpush1.bf16.msra.mxu0 0
        %1156 = vmatprep.subr.bf16.mxu0 0
        %1157 = vmatpush1.bf16.msra.mxu0 0
        %1158 = vmatprep.subr.bf16.mxu0 0
        %1159 = vmatpush1.bf16.msra.mxu0 0
        %1160 = vmatprep.subr.bf16.mxu0 0
        %1161 = vmatpush1.bf16.msra.mxu0 0
        %1162 = vmatprep.subr.bf16.mxu0 0
        %1163 = vmatpush1.bf16.msra.mxu0 0
        %1164 = vmatprep.subr.bf16.mxu0 0
        %1165 = vmatpush1.bf16.msra.mxu0 0
        %1166 = vmatprep.subr.bf16.mxu0 0
        %1167 = vmatpush1.bf16.msra.mxu0 0
        %1168 = vmatprep.subr.bf16.mxu0 0
        %1169 = vmatpush1.bf16.msra.mxu0 %v1152
        %1170 = vmatprep.subr.bf16.mxu0 0
        %1171 = vmatpush2.bf16.msra.mxu0 0
        %1172 = vmatprep.subr.bf16.mxu0 0
        %1173 = vmatpush2.bf16.msra.mxu0 0
        %1174 = vmatprep.subr.bf16.mxu0 0
        %1175 = vmatpush2.bf16.msra.mxu0 0
        %1176 = vmatprep.subr.bf16.mxu0 0
        %1177 = vmatpush2.bf16.msra.mxu0 0
        %1178 = vmatprep.subr.bf16.mxu0 0
        %1179 = vmatpush2.bf16.msra.mxu0 0
        %1180 = vmatprep.subr.bf16.mxu0 0
        %1181 = vmatpush2.bf16.msra.mxu0 0
        %1182 = vmatprep.subr.bf16.mxu0 0
        %1183 = vmatpush2.bf16.msra.mxu0 0
        %1184 = vmatprep.subr.bf16.mxu0 0
        %1185 = vmatpush2.bf16.msra.mxu0 0
        %1186 = vmatprep.mubr.bf16.mxu0 0
        %1187 = vmatmul.mubr.bf16.gmra.mxu0 %v1149
        %v1188 = vpop.f32.mrf.mxu0
        %v1189 = vadd.f32 0.0, %v1188
        %v1190 = vpop.f32.mrf.mxu0
        %v1191 = vpop.f32.mrf.mxu0
        %v1192 = vpop.f32.mrf.mxu0
        %1193 = vdwg.mxu0
        %v1194 = vsel %vm440, %v1051, 0.0
        %v1195 = vsel %vm440, %v1097, 0.0
        %v1196 = vadd.f32 %v1194, %v1195
        %v1197 = vsel %vm440, %v1143, 0.0
        %v1198 = vadd.f32 %v1196, %v1197
        %v1199 = vsel %vm440, %v1189, 0.0
        %v1200 = vadd.f32 %v1198, %v1199
        %v1201 = vld [vmem:[%s6] sm:$0x1]
        %v1203 = vlaneseq
        %v1204 = vshrl.u32 %v1203, 7
        %v1205 = vsub.s32 0, %v1204
        %v1206 = vrot.slane %v1201, %v1205
        %v1208 = vadd.f32 %v1200, %v1206
        %v1209 = vadd.f32 %v468, %v1208
        %v1210 = vld [vmem:[%s7] sm:$0x1]
        %v1211 = vld [vmem:[%s8] sm:$0x1]
        %v1212 = vsel %vm440, %v1209, 0.0
        %1213 = vadd.xlane.f32.xlu0 %v1212
        %v1214 = vpop.xlane.xlu0 %1213
        %v1215 = vmul.f32 %v1214, %v444
        %v1216 = vsub.f32 %v1209, %v1215
        %v1217 = vmul.f32 %v1216, %v1216
        %v1218 = vsel %vm440, %v1217, 0.0
        %1219 = vadd.xlane.f32.xlu0 %v1218
        %v1220 = vpop.xlane.xlu0 %1219
        %v1221 = vmul.f32 %v1220, %v444
        %v1222 = vadd.f32 %v1221, 1e-05
        %v1223 = vrsqrt.pop %v1222
        %v1224 = vmul.f32 %v1216, %v1223
        %v1226 = vlaneseq
        %v1227 = vshrl.u32 %v1226, 7
        %v1228 = vsub.s32 0, %v1227
        %v1229 = vrot.slane %v1210, %v1228
        %v1231 = vmul.f32 %v1224, %v1229
        %v1233 = vlaneseq
        %v1234 = vshrl.u32 %v1233, 7
        %v1235 = vsub.s32 0, %v1234
        %v1236 = vrot.slane %v1211, %v1235
        %v1238 = vadd.f32 %v1231, %v1236
        %v1239 = vpack.c.bf16 %v1238, %v1238
        %v1240 = vld [vmem:[%s9] sm:$0xf]
        %v1241 = vld [vmem:[%s9 + $0x4] sm:$0xf]
        %v1242 = vld [vmem:[%s9 + $0x8] sm:$0xf]
        %v1243 = vld [vmem:[%s9 + $0xc] sm:$0xf]
        %v1244 = vld [vmem:[%s10] sm:$0x1]
        %v1246 = vlaneseq
        %v1247 = vshrl.u32 %v1246, 7
        %v1248 = vsub.s32 0, %v1247
        %v1249 = vrot.slane %v1244, %v1248
        %v1255 = vunpack.c.l.b16 %v1240
        %v1256 = vunpack.c.l.b16 %v1241
        %v1257 = vunpack.c.l.b16 %v1242
        %v1258 = vunpack.c.l.b16 %v1243
        %v1259 = vpack.c.b16 %v1256, %v1255
        %v1260 = vpack.c.b16 %v1258, %v1257
        %v1264 = vsel %vm440, %v1239, 0
        %1266 = vmatprep.subr.bf16.mxu0 0
        %1267 = vmatpush1.bf16.msra.mxu0 0
        %1268 = vmatprep.subr.bf16.mxu0 0
        %1269 = vmatpush1.bf16.msra.mxu0 0
        %1270 = vmatprep.subr.bf16.mxu0 0
        %1271 = vmatpush1.bf16.msra.mxu0 0
        %1272 = vmatprep.subr.bf16.mxu0 0
        %1273 = vmatpush1.bf16.msra.mxu0 0
        %1274 = vmatprep.subr.bf16.mxu0 0
        %1275 = vmatpush1.bf16.msra.mxu0 0
        %1276 = vmatprep.subr.bf16.mxu0 0
        %1277 = vmatpush1.bf16.msra.mxu0 0
        %1278 = vmatprep.subr.bf16.mxu0 0
        %1279 = vmatpush1.bf16.msra.mxu0 %v1260
        %1280 = vmatprep.subr.bf16.mxu0 0
        %1281 = vmatpush1.bf16.msra.mxu0 %v1259
        %1282 = vmatprep.subr.bf16.mxu0 0
        %1283 = vmatpush2.bf16.msra.mxu0 0
        %1284 = vmatprep.subr.bf16.mxu0 0
        %1285 = vmatpush2.bf16.msra.mxu0 0
        %1286 = vmatprep.subr.bf16.mxu0 0
        %1287 = vmatpush2.bf16.msra.mxu0 0
        %1288 = vmatprep.subr.bf16.mxu0 0
        %1289 = vmatpush2.bf16.msra.mxu0 0
        %1290 = vmatprep.subr.bf16.mxu0 0
        %1291 = vmatpush2.bf16.msra.mxu0 0
        %1292 = vmatprep.subr.bf16.mxu0 0
        %1293 = vmatpush2.bf16.msra.mxu0 0
        %1294 = vmatprep.subr.bf16.mxu0 0
        %1295 = vmatpush2.bf16.msra.mxu0 0
        %1296 = vmatprep.subr.bf16.mxu0 0
        %1297 = vmatpush2.bf16.msra.mxu0 0
        %1298 = vmatprep.mubr.bf16.mxu0 0
        %1299 = vmatmul.mubr.bf16.gmra.mxu0 %v1264
        %v1300 = vpop.f32.mrf.mxu0
        %v1301 = vadd.f32 %v1249, %v1300
        %v1302 = vpop.f32.mrf.mxu0
        %v1303 = vpop.f32.mrf.mxu0
        %v1304 = vpop.f32.mrf.mxu0
        %1305 = vdwg.mxu0
        %v1306 = vmul.f32 %v1301, 0.5
        %v1307 = vmul.f32 %v1301, 0.70710677
        %v1308 = verf.f32.pop %v1307
        %v1309 = vadd.f32 %v1308, 1.0
        %v1310 = vmul.f32 %v1306, %v1309
        %v1311 = vpack.c.bf16 %v1310, %v1310
        %v1312 = vld [vmem:[%s11] sm:$0xf]
        %v1313 = vld [vmem:[%s11 + $0x4] sm:$0xf]
        %v1314 = vld [vmem:[%s11 + $0x8] sm:$0xf]
        %v1315 = vld [vmem:[%s11 + $0xc] sm:$0xf]
        %v1316 = vld [vmem:[%s11 + $0x10] sm:$0xf]
        %v1317 = vld [vmem:[%s11 + $0x14] sm:$0xf]
        %v1318 = vld [vmem:[%s11 + $0x18] sm:$0xf]
        %v1319 = vld [vmem:[%s11 + $0x1c] sm:$0xf]
        %v1320 = vld [vmem:[%s11 + $0x20] sm:$0xf]
        %v1321 = vld [vmem:[%s11 + $0x24] sm:$0xf]
        %v1322 = vld [vmem:[%s11 + $0x28] sm:$0xf]
        %v1323 = vld [vmem:[%s11 + $0x2c] sm:$0xf]
        %v1324 = vld [vmem:[%s11 + $0x30] sm:$0xf]
        %v1325 = vld [vmem:[%s11 + $0x34] sm:$0xf]
        %v1326 = vld [vmem:[%s11 + $0x38] sm:$0xf]
        %v1327 = vld [vmem:[%s11 + $0x3c] sm:$0xf]
        %v1328 = vld [vmem:[%s12] sm:$0x1]
        %v1330 = vlaneseq
        %v1331 = vshrl.u32 %v1330, 7
        %v1332 = vsub.s32 0, %v1331
        %v1333 = vrot.slane %v1328, %v1332
        %v1351 = vunpack.c.l.b16 %v1312
        %v1352 = vunpack.c.l.b16 %v1313
        %v1353 = vunpack.c.l.b16 %v1314
        %v1354 = vunpack.c.l.b16 %v1315
        %v1355 = vunpack.c.l.b16 %v1316
        %v1356 = vunpack.c.l.b16 %v1317
        %v1357 = vunpack.c.l.b16 %v1318
        %v1358 = vunpack.c.l.b16 %v1319
        %v1359 = vunpack.c.l.b16 %v1320
        %v1360 = vunpack.c.l.b16 %v1321
        %v1361 = vunpack.c.l.b16 %v1322
        %v1362 = vunpack.c.l.b16 %v1323
        %v1363 = vunpack.c.l.b16 %v1324
        %v1364 = vunpack.c.l.b16 %v1325
        %v1365 = vunpack.c.l.b16 %v1326
        %v1366 = vunpack.c.l.b16 %v1327
        %v1367 = vpack.c.b16 %v1352, %v1351
        %v1368 = vpack.c.b16 %v1354, %v1353
        %v1369 = vpack.c.b16 %v1356, %v1355
        %v1370 = vpack.c.b16 %v1358, %v1357
        %v1371 = vpack.c.b16 %v1360, %v1359
        %v1372 = vpack.c.b16 %v1362, %v1361
        %v1373 = vpack.c.b16 %v1364, %v1363
        %v1374 = vpack.c.b16 %v1366, %v1365
        %1383 = vmatprep.subr.bf16.mxu0 0
        %1384 = vmatpush1.bf16.msra.mxu0 %v1374
        %1385 = vmatprep.subr.bf16.mxu0 0
        %1386 = vmatpush1.bf16.msra.mxu0 %v1373
        %1387 = vmatprep.subr.bf16.mxu0 0
        %1388 = vmatpush1.bf16.msra.mxu0 %v1372
        %1389 = vmatprep.subr.bf16.mxu0 0
        %1390 = vmatpush1.bf16.msra.mxu0 %v1371
        %1391 = vmatprep.subr.bf16.mxu0 0
        %1392 = vmatpush1.bf16.msra.mxu0 %v1370
        %1393 = vmatprep.subr.bf16.mxu0 0
        %1394 = vmatpush1.bf16.msra.mxu0 %v1369
        %1395 = vmatprep.subr.bf16.mxu0 0
        %1396 = vmatpush1.bf16.msra.mxu0 %v1368
        %1397 = vmatprep.subr.bf16.mxu0 0
        %1398 = vmatpush1.bf16.msra.mxu0 %v1367
        %1399 = vmatprep.subr.bf16.mxu0 0
        %1400 = vmatpush2.bf16.msra.mxu0 0
        %1401 = vmatprep.subr.bf16.mxu0 0
        %1402 = vmatpush2.bf16.msra.mxu0 0
        %1403 = vmatprep.subr.bf16.mxu0 0
        %1404 = vmatpush2.bf16.msra.mxu0 0
        %1405 = vmatprep.subr.bf16.mxu0 0
        %1406 = vmatpush2.bf16.msra.mxu0 0
        %1407 = vmatprep.subr.bf16.mxu0 0
        %1408 = vmatpush2.bf16.msra.mxu0 0
        %1409 = vmatprep.subr.bf16.mxu0 0
        %1410 = vmatpush2.bf16.msra.mxu0 0
        %1411 = vmatprep.subr.bf16.mxu0 0
        %1412 = vmatpush2.bf16.msra.mxu0 0
        %1413 = vmatprep.subr.bf16.mxu0 0
        %1414 = vmatpush2.bf16.msra.mxu0 0
        %1415 = vmatprep.mubr.bf16.mxu0 0
        %1416 = vmatmul.mubr.bf16.gmra.mxu0 %v1311
        %v1417 = vpop.f32.mrf.mxu0
        %v1418 = vadd.f32 %v1333, %v1417
        %v1419 = vpop.f32.mrf.mxu0
        %v1420 = vpop.f32.mrf.mxu0
        %v1421 = vpop.f32.mrf.mxu0
        %1422 = vdwg.mxu0
        %v1423 = vadd.f32 %v1209, %v1418
        %1424 = vst.msk [vmem:[%s431] sm:$0xff] %vm440, %v1423
        %s1425 = sand.u32 %s313, 1
        %s1426 = scalar_lea.sflag [#allocation3], %s1425
        %s1427 = sand.u32 %s313, 1
        %s1428 = smul.addr %s1427, 8
        %s1429 = scalar_lea.vmem [#allocation2], %s1428
        // Predicated region
        $region73: #{tpu_custom_call.1} parent=71 // pred_check
          %p1430 = pneg %p323
        $region74: #{tpu_custom_call.1} parent=71 // pred_check_branch
          %1432 = sbr.rel (%p1430) target = $region76
        $region75: #{tpu_custom_call.1} parent=71 // pred_region
          %s1434 = ssub.s32 128, 128
          %1435 = vsyncadd %s1426, %s1434
          %s1436 = smul.addr %s27, 128
          %s1437 = scalar_lea.hbm %s13, %s1436
          %s1439 = sshll.u32 %s1429, 4
          %s1440 = int_to_ptr.vmem [resolvable:$true] %s1439
          %1442 = dma.vmem_to_hbm [thread:$0]  %s1440, 128, %s1437, %s1426
        $region76: #{tpu_custom_call.1} parent=71 // pred_fallthru
          _
      $region72: #{tpu_custom_call.1} parent=5 // pred_fallthru
        _
      %p1443 = scmp.le.s32.totalorder 2, %s22
      // Predicated region
      $region77: #{tpu_custom_call.1} parent=5 // pred_check
        %p1444 = pneg %p1443
      $region78: #{tpu_custom_call.1} parent=5 // pred_check_branch
        %1446 = sbr.rel (%p1444) target = $region80
      $region79: #{tpu_custom_call.1} parent=5 // pred_region
        %s1447 = ssub.s32 %s22, 2
        // Predicated region
        $region81: #{tpu_custom_call.1} parent=79 // pred_check
          %p1448 = pneg %p329
        $region82: #{tpu_custom_call.1} parent=79 // pred_check_branch
          %1450 = sbr.rel (%p1448) target = $region84
        $region83: #{tpu_custom_call.1} parent=79 // pred_region
          %s1451 = sand.u32 %s314, 1
          %s1452 = scalar_lea.sflag [#allocation3], %s1451
          %s1453 = sand.u32 %s314, 1
          %s1454 = smul.addr %s1453, 8
          %s1455 = scalar_lea.vmem [#allocation2], %s1454
          %1456 = dma.done %s1452, 128
        $region84: #{tpu_custom_call.1} parent=79 // pred_fallthru
          _
      $region80: #{tpu_custom_call.1} parent=5 // pred_fallthru
        _
    $region6: #{tpu_custom_call.1} parent=1 // loop_footer
      %s26 = sadd.s32 1, %s22
    $region7: #{tpu_custom_call.1} parent=1 // loop_footer_branch
      %21 = sbr.rel target = $region3
    $region8: #{tpu_custom_call.1} parent=1 // loop_exit
      _
    %1457 = vsyncpa [#allocation3], 1
    %s1458 = scalar_lea.sflag [#allocation3], 1
    %1459 = vsyncpa %s1458, 1

</llo_original>
